<compile_context>
chip_gen: v6e
topology: v6e:2x2x1
jax: 0.10.0
libtpu: 0.0.40
codegen_flags: <defaults>
</compile_context>

<pallas_src>
import jax
import jax.numpy as jnp
from jax.experimental import pallas as pl
from jax.experimental.pallas import tpu as pltpu


def big2small_conv2d_pallas(x, weights, biases, dilations):
    """x: (N, C_in, H, W) f32; weights[i]: (C_out, C_in, 1, K); biases[i]: (C_out,).
    Returns (N, C_out, H, W - (K-1)*sum(dilations))."""
    N, C_in, H, W = x.shape
    num_layers = len(weights)
    C_out, _, _, K = weights[0].shape
    assert C_out == C_in, "residual add requires c_out == c_in (as in the PyTorch module)"
    HW = H * W
    W_final = W - (K - 1) * sum(dilations)
    assert W_final >= 1, "time dimension too short for the dilation stack"

    # Pack parameters: (L*K, C_out, C_in) per-tap matrices and (L, C_out, 1) biases.
    w_all = jnp.stack(
        [jnp.transpose(w[:, :, 0, :], (2, 0, 1)) for w in weights], axis=0
    ).astype(jnp.float32).reshape(num_layers * K, C_out, C_in)
    b_all = jnp.stack(biases, axis=0).astype(jnp.float32)[:, :, None]  # (L, C_out, 1)

    x_flat = x.reshape(N, C_in, HW)  # NCHW -> (N, C, H*W) is a contiguous reshape

    def kernel(x_ref, w_ref, b_ref, o_ref):
        h = x_ref[0]  # (C_in, HW) f32 — kept in f32 through the whole dependent chain
        for layer in range(num_layers):
            d = dilations[layer]
            # tap 0: no shift
            acc = jnp.dot(w_ref[layer * K + 0], h, preferred_element_type=jnp.float32)
            off = 0
            for j in range(1, K):
                off += d
                # shifted[:, r] == h[:, r + off]; wraparound only lands in invalid columns.
                shifted = pltpu.roll(h, HW - off, 1)
                acc = acc + jnp.dot(
                    w_ref[layer * K + j], shifted, preferred_element_type=jnp.float32
                )
            acc = acc + b_ref[layer]  # (C_out, 1) broadcast over lanes
            if layer + 1 < num_layers:
                h = acc + h  # PyTorch: x = _out + x[..., :_out.shape[-1]]
            else:
                o_ref[0] = acc.astype(o_ref.dtype)  # returned _out has no final residual

    out_flat = pl.pallas_call(
        kernel,
        out_shape=jax.ShapeDtypeStruct((N, C_out, HW), x.dtype),
        grid=(N,),
        in_specs=[
            pl.BlockSpec((1, C_in, HW), lambda n: (n, 0, 0)),
            pl.BlockSpec((num_layers * K, C_out, C_in), lambda n: (0, 0, 0)),
            pl.BlockSpec((num_layers, C_out, 1), lambda n: (0, 0, 0)),
        ],
        out_specs=pl.BlockSpec((1, C_out, HW), lambda n: (n, 0, 0)),
        compiler_params=pltpu.CompilerParams(dimension_semantics=("parallel",)),
    )(x_flat, w_all, b_all)

    return out_flat.reshape(N, C_out, H, W)[..., :W_final]


def big2small_conv2d_reference(x, weights, biases, dilations):
    """Pure-JAX mirror of the PyTorch forward (eval mode)."""
    out = 0.0
    for i in range(len(weights)):
        out = jax.lax.conv_general_dilated(
            x,
            weights[i],
            window_strides=(1, 1),
            padding="VALID",
            rhs_dilation=(1, dilations[i]),
            dimension_numbers=("NCHW", "OIHW", "NCHW"),
        ) + biases[i][None, :, None, None]
        x = out + x[..., : out.shape[-1]]
    return out


if __name__ == "__main__":
    # Module defaults: kernel_size = base_dilated_rate + 1 = 2, 4 layers, dilations 1,2,4,8
    # (total receptive field 16 along time, so W must be >= 16).
    N, C, H, W = 2, 32, 16, 32  # batch=2, c_in=c_out=32 (residual needs equal), nodes=16, time=32
    K = 2
    num_layers = 4
    dilations = [1, 2, 4, 8]

    key = jax.random.PRNGKey(0)
    kx, *kws = jax.random.split(key, 1 + 2 * num_layers)
    x = jax.random.normal(kx, (N, C, H, W), dtype=jnp.float32)
    weights, biases = [], []
    for i in range(num_layers):
        weights.append(0.1 * jax.random.normal(kws[2 * i], (C, C, 1, K), dtype=jnp.float32))
        biases.append(0.1 * jax.random.normal(kws[2 * i + 1], (C,), dtype=jnp.float32))

    out = big2small_conv2d_pallas(x, weights, biases, dilations)
    out = jax.block_until_ready(out)

    ref = big2small_conv2d_reference(x, weights, biases, dilations)
    W_final = W - (K - 1) * sum(dilations)
    assert out.shape == (N, C, H, W_final), out.shape
    if not jnp.allclose(out, ref, atol=1e-3, rtol=1e-3):
        max_err = float(jnp.max(jnp.abs(out - ref)))
        raise AssertionError(f"Pallas output mismatch vs reference, max err {max_err}")

    print("KERNEL_OK")
</pallas_src>

<mosaic_0001>
module attributes {stable_mosaic.version = 11 : i64} {
  func.func @kernel(%arg0: i32, %arg1: memref<1x32x512xf32, #tpu.memory_space<vmem>>, %arg2: memref<8x32x32xf32, #tpu.memory_space<vmem>>, %arg3: memref<4x32x1xf32, #tpu.memory_space<vmem>>, %arg4: memref<1x32x512xf32, #tpu.memory_space<vmem>>) attributes {dimension_semantics = [#tpu.dimension_semantics<parallel>], iteration_bounds = array<i64: 2>, scalar_prefetch = 0 : i64, scratch_operands = 0 : i64, tpu.core_type = #tpu.core_type<tc>, window_params = [{transform_indices = @transform_0, window_bounds = array<i64: 1, 32, 512>}, {pipeline_mode = #tpu.pipeline_mode<synchronous>, transform_indices = @transform_1, window_bounds = array<i64: 8, 32, 32>}, {pipeline_mode = #tpu.pipeline_mode<synchronous>, transform_indices = @transform_2, window_bounds = array<i64: 4, 32, 1>}, {transform_indices = @transform_3, window_bounds = array<i64: 1, 32, 512>}]} {
    %c0 = arith.constant 0 : index
    %c0_0 = arith.constant 0 : index
    %c0_1 = arith.constant 0 : index
    %0 = vector.load %arg1[%c0, %c0_0, %c0_1] : memref<1x32x512xf32, #tpu.memory_space<vmem>>, vector<1x32x512xf32>
    %1 = vector.shape_cast %0 : vector<1x32x512xf32> to vector<32x512xf32>
    %c0_2 = arith.constant 0 : index
    %c0_3 = arith.constant 0 : index
    %c0_4 = arith.constant 0 : index
    %2 = vector.load %arg2[%c0_2, %c0_3, %c0_4] : memref<8x32x32xf32, #tpu.memory_space<vmem>>, vector<1x32x32xf32>
    %3 = vector.shape_cast %2 : vector<1x32x32xf32> to vector<32x32xf32>
    %cst = arith.constant dense<0.000000e+00> : vector<32x512xf32>
    %4 = tpu.matmul %3, %1, %cst {dimension_numbers = #tpu.dot_dimension_numbers<[1], [0], [0], [1], [0, 0, 1, 1], [], []>} : vector<32x32xf32>, vector<32x512xf32>, vector<32x512xf32> -> vector<32x512xf32>
    %c511_i32 = arith.constant 511 : i32
    %5 = tpu.dynamic_rotate %1 by %c511_i32 dim 1 : vector<32x512xf32>, i32 -> vector<32x512xf32>
    %c1 = arith.constant 1 : index
    %c0_5 = arith.constant 0 : index
    %c0_6 = arith.constant 0 : index
    %6 = vector.load %arg2[%c1, %c0_5, %c0_6] : memref<8x32x32xf32, #tpu.memory_space<vmem>>, vector<1x32x32xf32>
    %7 = vector.shape_cast %6 : vector<1x32x32xf32> to vector<32x32xf32>
    %cst_7 = arith.constant dense<0.000000e+00> : vector<32x512xf32>
    %8 = tpu.matmul %7, %5, %cst_7 {dimension_numbers = #tpu.dot_dimension_numbers<[1], [0], [0], [1], [0, 0, 1, 1], [], []>} : vector<32x32xf32>, vector<32x512xf32>, vector<32x512xf32> -> vector<32x512xf32>
    %9 = arith.addf %4, %8 : vector<32x512xf32>
    %c0_8 = arith.constant 0 : index
    %c0_9 = arith.constant 0 : index
    %c0_10 = arith.constant 0 : index
    %10 = vector.load %arg3[%c0_8, %c0_9, %c0_10] : memref<4x32x1xf32, #tpu.memory_space<vmem>>, vector<1x32x1xf32>
    %11 = vector.shape_cast %10 : vector<1x32x1xf32> to vector<32x1xf32>
    %12 = vector.broadcast %11 : vector<32x1xf32> to vector<32x512xf32>
    %13 = arith.addf %9, %12 : vector<32x512xf32>
    %14 = arith.addf %13, %1 : vector<32x512xf32>
    %c2 = arith.constant 2 : index
    %c0_11 = arith.constant 0 : index
    %c0_12 = arith.constant 0 : index
    %15 = vector.load %arg2[%c2, %c0_11, %c0_12] : memref<8x32x32xf32, #tpu.memory_space<vmem>>, vector<1x32x32xf32>
    %16 = vector.shape_cast %15 : vector<1x32x32xf32> to vector<32x32xf32>
    %cst_13 = arith.constant dense<0.000000e+00> : vector<32x512xf32>
    %17 = tpu.matmul %16, %14, %cst_13 {dimension_numbers = #tpu.dot_dimension_numbers<[1], [0], [0], [1], [0, 0, 1, 1], [], []>} : vector<32x32xf32>, vector<32x512xf32>, vector<32x512xf32> -> vector<32x512xf32>
    %c510_i32 = arith.constant 510 : i32
    %18 = tpu.dynamic_rotate %14 by %c510_i32 dim 1 : vector<32x512xf32>, i32 -> vector<32x512xf32>
    %c3 = arith.constant 3 : index
    %c0_14 = arith.constant 0 : index
    %c0_15 = arith.constant 0 : index
    %19 = vector.load %arg2[%c3, %c0_14, %c0_15] : memref<8x32x32xf32, #tpu.memory_space<vmem>>, vector<1x32x32xf32>
    %20 = vector.shape_cast %19 : vector<1x32x32xf32> to vector<32x32xf32>
    %cst_16 = arith.constant dense<0.000000e+00> : vector<32x512xf32>
    %21 = tpu.matmul %20, %18, %cst_16 {dimension_numbers = #tpu.dot_dimension_numbers<[1], [0], [0], [1], [0, 0, 1, 1], [], []>} : vector<32x32xf32>, vector<32x512xf32>, vector<32x512xf32> -> vector<32x512xf32>
    %22 = arith.addf %17, %21 : vector<32x512xf32>
    %c1_17 = arith.constant 1 : index
    %c0_18 = arith.constant 0 : index
    %c0_19 = arith.constant 0 : index
    %23 = vector.load %arg3[%c1_17, %c0_18, %c0_19] : memref<4x32x1xf32, #tpu.memory_space<vmem>>, vector<1x32x1xf32>
    %24 = vector.shape_cast %23 : vector<1x32x1xf32> to vector<32x1xf32>
    %25 = vector.broadcast %24 : vector<32x1xf32> to vector<32x512xf32>
    %26 = arith.addf %22, %25 : vector<32x512xf32>
    %27 = arith.addf %26, %14 : vector<32x512xf32>
    %c4 = arith.constant 4 : index
    %c0_20 = arith.constant 0 : index
    %c0_21 = arith.constant 0 : index
    %28 = vector.load %arg2[%c4, %c0_20, %c0_21] : memref<8x32x32xf32, #tpu.memory_space<vmem>>, vector<1x32x32xf32>
    %29 = vector.shape_cast %28 : vector<1x32x32xf32> to vector<32x32xf32>
    %cst_22 = arith.constant dense<0.000000e+00> : vector<32x512xf32>
    %30 = tpu.matmul %29, %27, %cst_22 {dimension_numbers = #tpu.dot_dimension_numbers<[1], [0], [0], [1], [0, 0, 1, 1], [], []>} : vector<32x32xf32>, vector<32x512xf32>, vector<32x512xf32> -> vector<32x512xf32>
    %c508_i32 = arith.constant 508 : i32
    %31 = tpu.dynamic_rotate %27 by %c508_i32 dim 1 : vector<32x512xf32>, i32 -> vector<32x512xf32>
    %c5 = arith.constant 5 : index
    %c0_23 = arith.constant 0 : index
    %c0_24 = arith.constant 0 : index
    %32 = vector.load %arg2[%c5, %c0_23, %c0_24] : memref<8x32x32xf32, #tpu.memory_space<vmem>>, vector<1x32x32xf32>
    %33 = vector.shape_cast %32 : vector<1x32x32xf32> to vector<32x32xf32>
    %cst_25 = arith.constant dense<0.000000e+00> : vector<32x512xf32>
    %34 = tpu.matmul %33, %31, %cst_25 {dimension_numbers = #tpu.dot_dimension_numbers<[1], [0], [0], [1], [0, 0, 1, 1], [], []>} : vector<32x32xf32>, vector<32x512xf32>, vector<32x512xf32> -> vector<32x512xf32>
    %35 = arith.addf %30, %34 : vector<32x512xf32>
    %c2_26 = arith.constant 2 : index
    %c0_27 = arith.constant 0 : index
    %c0_28 = arith.constant 0 : index
    %36 = vector.load %arg3[%c2_26, %c0_27, %c0_28] : memref<4x32x1xf32, #tpu.memory_space<vmem>>, vector<1x32x1xf32>
    %37 = vector.shape_cast %36 : vector<1x32x1xf32> to vector<32x1xf32>
    %38 = vector.broadcast %37 : vector<32x1xf32> to vector<32x512xf32>
    %39 = arith.addf %35, %38 : vector<32x512xf32>
    %40 = arith.addf %39, %27 : vector<32x512xf32>
    %c6 = arith.constant 6 : index
    %c0_29 = arith.constant 0 : index
    %c0_30 = arith.constant 0 : index
    %41 = vector.load %arg2[%c6, %c0_29, %c0_30] : memref<8x32x32xf32, #tpu.memory_space<vmem>>, vector<1x32x32xf32>
    %42 = vector.shape_cast %41 : vector<1x32x32xf32> to vector<32x32xf32>
    %cst_31 = arith.constant dense<0.000000e+00> : vector<32x512xf32>
    %43 = tpu.matmul %42, %40, %cst_31 {dimension_numbers = #tpu.dot_dimension_numbers<[1], [0], [0], [1], [0, 0, 1, 1], [], []>} : vector<32x32xf32>, vector<32x512xf32>, vector<32x512xf32> -> vector<32x512xf32>
    %c504_i32 = arith.constant 504 : i32
    %44 = tpu.dynamic_rotate %40 by %c504_i32 dim 1 : vector<32x512xf32>, i32 -> vector<32x512xf32>
    %c7 = arith.constant 7 : index
    %c0_32 = arith.constant 0 : index
    %c0_33 = arith.constant 0 : index
    %45 = vector.load %arg2[%c7, %c0_32, %c0_33] : memref<8x32x32xf32, #tpu.memory_space<vmem>>, vector<1x32x32xf32>
    %46 = vector.shape_cast %45 : vector<1x32x32xf32> to vector<32x32xf32>
    %cst_34 = arith.constant dense<0.000000e+00> : vector<32x512xf32>
    %47 = tpu.matmul %46, %44, %cst_34 {dimension_numbers = #tpu.dot_dimension_numbers<[1], [0], [0], [1], [0, 0, 1, 1], [], []>} : vector<32x32xf32>, vector<32x512xf32>, vector<32x512xf32> -> vector<32x512xf32>
    %48 = arith.addf %43, %47 : vector<32x512xf32>
    %c3_35 = arith.constant 3 : index
    %c0_36 = arith.constant 0 : index
    %c0_37 = arith.constant 0 : index
    %49 = vector.load %arg3[%c3_35, %c0_36, %c0_37] : memref<4x32x1xf32, #tpu.memory_space<vmem>>, vector<1x32x1xf32>
    %50 = vector.shape_cast %49 : vector<1x32x1xf32> to vector<32x1xf32>
    %51 = vector.broadcast %50 : vector<32x1xf32> to vector<32x512xf32>
    %52 = arith.addf %48, %51 : vector<32x512xf32>
    %c0_38 = arith.constant 0 : index
    %c0_39 = arith.constant 0 : index
    %c0_40 = arith.constant 0 : index
    %53 = vector.load %arg4[%c0_38, %c0_39, %c0_40] : memref<1x32x512xf32, #tpu.memory_space<vmem>>, vector<1x32x512xf32>
    %54 = vector.shape_cast %53 : vector<1x32x512xf32> to vector<32x512xf32>
    %55 = vector.shape_cast %52 : vector<32x512xf32> to vector<1x32x512xf32>
    tpu.vector_store %arg4[%c0_38, %c0_39, %c0_40], %55 {strides = array<i32>} : memref<1x32x512xf32, #tpu.memory_space<vmem>>, vector<1x32x512xf32>,
    return
  }
  func.func @transform_0(%arg0: i32) -> (i32, i32, i32) {
    %c0_i32 = arith.constant 0 : i32
    %c0_i32_0 = arith.constant 0 : i32
    %c0_i32_1 = arith.constant 0 : i32
    return %arg0, %c0_i32, %c0_i32_0 : i32, i32, i32
  }
  func.func @transform_1(%arg0: i32) -> (i32, i32, i32) {
    %c0_i32 = arith.constant 0 : i32
    %c0_i32_0 = arith.constant 0 : i32
    %c0_i32_1 = arith.constant 0 : i32
    %c0_i32_2 = arith.constant 0 : i32
    return %c0_i32, %c0_i32_0, %c0_i32_1 : i32, i32, i32
  }
  func.func @transform_2(%arg0: i32) -> (i32, i32, i32) {
    %c0_i32 = arith.constant 0 : i32
    %c0_i32_0 = arith.constant 0 : i32
    %c0_i32_1 = arith.constant 0 : i32
    %c0_i32_2 = arith.constant 0 : i32
    return %c0_i32, %c0_i32_0, %c0_i32_1 : i32, i32, i32
  }
  func.func @transform_3(%arg0: i32) -> (i32, i32, i32) {
    %c0_i32 = arith.constant 0 : i32
    %c0_i32_0 = arith.constant 0 : i32
    %c0_i32_1 = arith.constant 0 : i32
    return %arg0, %c0_i32, %c0_i32_0 : i32, i32, i32
  }
}

</mosaic_0001>

<llo_original>
// kernel: tpu_custom_call.1
$region0: #{tpu_custom_call.1}
  #allocation0 [shape = 'u32[]', space=smem, size = 0x4, offset = 0x4, fixed_abs, tag = 'smem constant byte address 0x4 - core index']
  #allocation1 [shape = 'u32[144,128]{1,0:T(1,128)}', space=vmem, size = 0x12000, scoped, tag = 'internal scratch']
  %s0 = inlined_call_operand.hbm [shape: f32[2,32,512], index: 0, kind: input, shape index: {}]
  %s1 = inlined_call_operand.hbm [shape: f32[8,32,32], index: 1, kind: input, shape index: {}]
  %s2 = inlined_call_operand.vmem [shape: f32[4,32,1], index: 2, kind: input, shape index: {}]
  %s3 = inlined_call_operand.hbm [shape: f32[2,32,512], index: 3, kind: output, shape index: {}]
  %s4 = sld [smem:[#allocation0]]
  $region53: #{tpu_custom_call.1} parent=0
    _
  %s6 = ssub.s32 1, %s4
  %s7 = scalar_select 0, %s6, %s4
  $region1: #{tpu_custom_call.1} parent=0
    #allocation2 [shape = 'u8[131072]{0}', space=vmem, size = 0x20000, scoped, tag = 'input window, operand 0']
    #allocation3 [shape = 's32[2]{0}', space=sflag, size = 0x8, scoped, tag = 'scoped memory for tpu_custom_call.1']
    #allocation4 [shape = 's32[2]{0}', space=sflag, size = 0x8, scoped, tag = 'scoped memory for tpu_custom_call.1']
    #allocation5 [shape = 'u8[131072]{0}', space=vmem, size = 0x20000, scoped, tag = 'input window, operand 1, single buffered']
    #allocation6 [shape = 's32[1]{0}', space=sflag, size = 0x4, scoped, tag = 'scoped memory for tpu_custom_call.1']
    #allocation7 [shape = 'u8[131072]{0}', space=vmem, size = 0x20000, scoped, tag = 'output window, operand 0']
    %8 = vsyncpa [#allocation3], 0
    %s9 = scalar_lea.sflag [#allocation3], 1
    %10 = vsyncpa %s9, 0
    %11 = vsyncpa [#allocation6], 0
    %12 = vsyncpa [#allocation4], 0
    %s13 = scalar_lea.sflag [#allocation4], 1
    %14 = vsyncpa %s13, 0
    loop: start=0, step=1, limit=4
    $region2: #{tpu_custom_call.1} parent=1 // loop_pre_header
      _
    $region3: #{tpu_custom_call.1} parent=1 // loop_header
      %s16 = sphi 0, %s20
      %p17 = scmp.ge.s32.totalorder %s16, 4
      %s26 = sphi 0, %s28
      %s29 = sphi 0, %s26
      %s30 = sphi 0, %s29
      %s46 = sphi 0, %s30
      %s50 = sphi 0, %s50
      %s52 = sphi 0, %s50
      %s53 = sphi 0, %s52
      %s67 = sphi 0, %s53
      %s71 = sphi 0, %s71
      %s73 = sphi 0, %s71
      %s74 = sphi 0, %s73
      %s88 = sphi 0, %s74
      %s94 = sphi 0, %s96
      %s97 = sphi 0, %s94
      %s98 = sphi 0, %s97
      %s114 = sphi 0, %s98
    $region4: #{tpu_custom_call.1} parent=1 // loop_header_branch
      %19 = sbr.rel (%p17) target = $region8
    $region5: #{tpu_custom_call.1} parent=1 // loop_body
      %s21 = ssub.s32 %s16, 1
      %s22 = ssub.s32 %s16, 2
      %s23 = sadd.s32 %s16, 1
      %s24 = ssub.s32 %s16, %s23
      %p25 = scmp.eq.s32.totalorder %s24, 0
      %s27 = sadd.s32 %s26, 1
      %s28 = scalar_select %p25, %s26, %s27
      %p31 = pneg %p25
      %p32 = scmp.eq.s32.totalorder %s16, 1
      %p33 = por %p31, %p32
      %p34 = scmp.ne.s32.totalorder %s26, %s29
      %p35 = scmp.eq.s32.totalorder %s16, 0
      %p36 = por %p34, %p35
      %p37 = scmp.ne.s32.totalorder %s26, %s29
      %p38 = scmp.eq.s32.totalorder %s21, 1
      %p39 = por %p37, %p38
      %p40 = scmp.ne.s32.totalorder %s29, %s30
      %p41 = scmp.eq.s32.totalorder %s21, 0
      %p42 = por %p40, %p41
      %p43 = scmp.ne.s32.totalorder %s29, %s30
      %p44 = scmp.eq.s32.totalorder %s22, 1
      %p45 = por %p43, %p44
      %p47 = scmp.ne.s32.totalorder %s30, %s46
      %p48 = scmp.eq.s32.totalorder %s22, 0
      %p49 = por %p47, %p48
      %s51 = sadd.s32 %s50, 1
      %p54 = scmp.eq.s32.totalorder %s16, 1
      %p55 = scmp.ne.s32.totalorder %s50, %s52
      %p56 = scmp.eq.s32.totalorder %s16, 0
      %p57 = por %p55, %p56
      %p58 = scmp.ne.s32.totalorder %s50, %s52
      %p59 = scmp.eq.s32.totalorder %s21, 1
      %p60 = por %p58, %p59
      %p61 = scmp.ne.s32.totalorder %s52, %s53
      %p62 = scmp.eq.s32.totalorder %s21, 0
      %p63 = por %p61, %p62
      %p64 = scmp.ne.s32.totalorder %s52, %s53
      %p65 = scmp.eq.s32.totalorder %s22, 1
      %p66 = por %p64, %p65
      %p68 = scmp.ne.s32.totalorder %s53, %s67
      %p69 = scmp.eq.s32.totalorder %s22, 0
      %p70 = por %p68, %p69
      %s72 = sadd.s32 %s71, 1
      %p75 = scmp.eq.s32.totalorder %s16, 1
      %p76 = scmp.ne.s32.totalorder %s71, %s73
      %p77 = scmp.eq.s32.totalorder %s16, 0
      %p78 = por %p76, %p77
      %p79 = scmp.ne.s32.totalorder %s71, %s73
      %p80 = scmp.eq.s32.totalorder %s21, 1
      %p81 = por %p79, %p80
      %p82 = scmp.ne.s32.totalorder %s73, %s74
      %p83 = scmp.eq.s32.totalorder %s21, 0
      %p84 = por %p82, %p83
      %p85 = scmp.ne.s32.totalorder %s73, %s74
      %p86 = scmp.eq.s32.totalorder %s22, 1
      %p87 = por %p85, %p86
      %p89 = scmp.ne.s32.totalorder %s74, %s88
      %p90 = scmp.eq.s32.totalorder %s22, 0
      %p91 = por %p89, %p90
      %s92 = ssub.s32 %s16, %s23
      %p93 = scmp.eq.s32.totalorder %s92, 0
      %s95 = sadd.s32 %s94, 1
      %s96 = scalar_select %p93, %s94, %s95
      %p99 = pneg %p93
      %p100 = scmp.eq.s32.totalorder %s16, 1
      %p101 = por %p99, %p100
      %p102 = scmp.ne.s32.totalorder %s94, %s97
      %p103 = scmp.eq.s32.totalorder %s16, 0
      %p104 = por %p102, %p103
      %p105 = scmp.ne.s32.totalorder %s94, %s97
      %p106 = scmp.eq.s32.totalorder %s21, 1
      %p107 = por %p105, %p106
      %p108 = scmp.ne.s32.totalorder %s97, %s98
      %p109 = scmp.eq.s32.totalorder %s21, 0
      %p110 = por %p108, %p109
      %p111 = scmp.ne.s32.totalorder %s97, %s98
      %p112 = scmp.eq.s32.totalorder %s22, 1
      %p113 = por %p111, %p112
      %p115 = scmp.ne.s32.totalorder %s98, %s114
      %p116 = scmp.eq.s32.totalorder %s22, 0
      %p117 = por %p115, %p116
      %p118 = scmp.le.s32.totalorder 1, %s16
      %p119 = scmp.lt.s32.totalorder %s16, 3
      %p120 = pnand %p118, %p119
      %p121 = pneg %p120
      // Predicated region
      $region9: #{tpu_custom_call.1} parent=5 // pred_check
        _
      $region10: #{tpu_custom_call.1} parent=5 // pred_check_branch
        %123 = sbr.rel (%p120) target = $region12
      $region11: #{tpu_custom_call.1} parent=5 // pred_region
        %s124 = ssub.s32 %s16, 1
        // Predicated region
        $region13: #{tpu_custom_call.1} parent=11 // pred_check
          %p125 = pneg %p63
        $region14: #{tpu_custom_call.1} parent=11 // pred_check_branch
          %127 = sbr.rel (%p125) target = $region16
        $region15: #{tpu_custom_call.1} parent=11 // pred_region
          %s129 = ssub.s32 4096, 4096
          %130 = vsyncadd [#allocation6], %s129
          %s131 = sshll.u32 [#allocation5], 4
          %s132 = int_to_ptr.vmem [resolvable:$true] %s131
          %137 = dma.hbm_to_vmem [thread:$0]  %s1, 4096, %s132, [#allocation6], 128, 128, 8
        $region16: #{tpu_custom_call.1} parent=11 // pred_fallthru
          _
        // Predicated region
        $region17: #{tpu_custom_call.1} parent=11 // pred_check
          %p138 = pneg %p84
        $region18: #{tpu_custom_call.1} parent=11 // pred_check_branch
          %140 = sbr.rel (%p138) target = $region20
        $region19: #{tpu_custom_call.1} parent=11 // pred_region
          _
        $region20: #{tpu_custom_call.1} parent=11 // pred_fallthru
          _
      $region12: #{tpu_custom_call.1} parent=5 // pred_fallthru
        _
      %p141 = scmp.lt.s32.totalorder %s16, 2
      // Predicated region
      $region21: #{tpu_custom_call.1} parent=5 // pred_check
        %p142 = pneg %p141
      $region22: #{tpu_custom_call.1} parent=5 // pred_check_branch
        %144 = sbr.rel (%p142) target = $region24
      $region23: #{tpu_custom_call.1} parent=5 // pred_region
        // Predicated region
        $region25: #{tpu_custom_call.1} parent=23 // pred_check
          %p145 = pneg %p36
        $region26: #{tpu_custom_call.1} parent=23 // pred_check_branch
          %147 = sbr.rel (%p145) target = $region28
        $region27: #{tpu_custom_call.1} parent=23 // pred_region
          %s148 = sand.u32 %s26, 1
          %s149 = scalar_lea.sflag [#allocation3], %s148
          %s150 = sand.u32 %s26, 1
          %s151 = smul.addr %s150, 128
          %s152 = scalar_lea.vmem [#allocation2], %s151
          %s154 = ssub.s32 2048, 2048
          %155 = vsyncadd %s149, %s154
          %s156 = smul.addr %s16, 16
          %s157 = smul.addr %s156, 128
          %s158 = scalar_lea.hbm %s0, %s157
          %s159 = sshll.u32 %s152, 4
          %s160 = int_to_ptr.vmem [resolvable:$true] %s159
          %165 = dma.hbm_to_vmem [thread:$0]  %s158, 2048, %s160, %s149, 512, 512, 32
        $region28: #{tpu_custom_call.1} parent=23 // pred_fallthru
          _
      $region24: #{tpu_custom_call.1} parent=5 // pred_fallthru
        _
      %p166 = scmp.le.s32.totalorder 1, %s16
      %p167 = scmp.lt.s32.totalorder %s16, 3
      %p168 = pnand %p166, %p167
      %p169 = pneg %p168
      // Predicated region
      $region29: #{tpu_custom_call.1} parent=5 // pred_check
        _
      $region30: #{tpu_custom_call.1} parent=5 // pred_check_branch
        %171 = sbr.rel (%p168) target = $region32
      $region31: #{tpu_custom_call.1} parent=5 // pred_region
        %s172 = ssub.s32 %s16, 1
        %s173 = sand.u32 %s29, 1
        %s174 = scalar_lea.sflag [#allocation3], %s173
        %s175 = sand.u32 %s29, 1
        %s176 = smul.addr %s175, 128
        %s177 = scalar_lea.vmem [#allocation2], %s176
        // Predicated region
        $region33: #{tpu_custom_call.1} parent=31 // pred_check
          %p178 = pneg %p42
        $region34: #{tpu_custom_call.1} parent=31 // pred_check_branch
          %180 = sbr.rel (%p178) target = $region36
        $region35: #{tpu_custom_call.1} parent=31 // pred_region
          %181 = dma.done %s174, 2048
        $region36: #{tpu_custom_call.1} parent=31 // pred_fallthru
          _
        // Predicated region
        $region37: #{tpu_custom_call.1} parent=31 // pred_check
          %p182 = pneg %p63
        $region38: #{tpu_custom_call.1} parent=31 // pred_check_branch
          %184 = sbr.rel (%p182) target = $region40
        $region39: #{tpu_custom_call.1} parent=31 // pred_region
          %185 = dma.done [#allocation6], 4096
        $region40: #{tpu_custom_call.1} parent=31 // pred_fallthru
          _
        %s186 = sand.u32 %s29, 1
        %s187 = scalar_lea.sflag [#allocation3], %s186
        %s188 = sand.u32 %s29, 1
        %s189 = smul.addr %s188, 128
        %s190 = scalar_lea.vmem [#allocation2], %s189
        %p191 = pneg %p42
        %p192 = pneg %p39
        %p193 = pneg %p63
        %p194 = pneg %p60
        %p195 = pneg %p84
        %p196 = pneg %p81
        %p197 = pneg %p110
        %p198 = pneg %p107
        %s199 = sand.u32 %s97, 1
        %s200 = scalar_lea.sflag [#allocation4], %s199
        %s201 = sand.u32 %s97, 1
        %s202 = smul.addr %s201, 128
        %s203 = scalar_lea.vmem [#allocation7], %s202
        %v204 = vld [vmem:[%s177] sm:$0xff]
        %v205 = vld [vmem:[%s177 + $0x8] sm:$0xff]
        %v206 = vld [vmem:[%s177 + $0x10] sm:$0xff]
        %v207 = vld [vmem:[%s177 + $0x18] sm:$0xff]
        %v208 = vld [vmem:[%s177 + $0x20] sm:$0xff]
        %v209 = vld [vmem:[%s177 + $0x28] sm:$0xff]
        %v210 = vld [vmem:[%s177 + $0x30] sm:$0xff]
        %v211 = vld [vmem:[%s177 + $0x38] sm:$0xff]
        %v212 = vld [vmem:[%s177 + $0x40] sm:$0xff]
        %v213 = vld [vmem:[%s177 + $0x48] sm:$0xff]
        %v214 = vld [vmem:[%s177 + $0x50] sm:$0xff]
        %v215 = vld [vmem:[%s177 + $0x58] sm:$0xff]
        %v216 = vld [vmem:[%s177 + $0x60] sm:$0xff]
        %v217 = vld [vmem:[%s177 + $0x68] sm:$0xff]
        %v218 = vld [vmem:[%s177 + $0x70] sm:$0xff]
        %v219 = vld [vmem:[%s177 + $0x78] sm:$0xff]
        %v220 = vld [vmem:[#allocation5] sm:$0xff]
        %v221 = vld [vmem:[#allocation5 + $0x8] sm:$0xff]
        %v222 = vld [vmem:[#allocation5 + $0x10] sm:$0xff]
        %v223 = vld [vmem:[#allocation5 + $0x18] sm:$0xff]
        %224 = vrot.lane.b32.xlu0 %v204, 127
        %v225 = vpop.permute.xlu0 %224
        %226 = vrot.lane.b32.xlu0 %v208, 127
        %v227 = vpop.permute.xlu0 %226
        %228 = vrot.lane.b32.xlu0 %v212, 127
        %v229 = vpop.permute.xlu0 %228
        %230 = vrot.lane.b32.xlu0 %v216, 127
        %v231 = vpop.permute.xlu0 %230
        %232 = vrot.lane.b32.xlu0 %v205, 127
        %v233 = vpop.permute.xlu0 %232
        %234 = vrot.lane.b32.xlu0 %v209, 127
        %v235 = vpop.permute.xlu0 %234
        %236 = vrot.lane.b32.xlu0 %v213, 127
        %v237 = vpop.permute.xlu0 %236
        %238 = vrot.lane.b32.xlu0 %v217, 127
        %v239 = vpop.permute.xlu0 %238
        %240 = vrot.lane.b32.xlu0 %v206, 127
        %v241 = vpop.permute.xlu0 %240
        %242 = vrot.lane.b32.xlu0 %v210, 127
        %v243 = vpop.permute.xlu0 %242
        %244 = vrot.lane.b32.xlu0 %v214, 127
        %v245 = vpop.permute.xlu0 %244
        %246 = vrot.lane.b32.xlu0 %v218, 127
        %v247 = vpop.permute.xlu0 %246
        %248 = vrot.lane.b32.xlu0 %v207, 127
        %v249 = vpop.permute.xlu0 %248
        %250 = vrot.lane.b32.xlu0 %v211, 127
        %v251 = vpop.permute.xlu0 %250
        %252 = vrot.lane.b32.xlu0 %v215, 127
        %v253 = vpop.permute.xlu0 %252
        %254 = vrot.lane.b32.xlu0 %v219, 127
        %v255 = vpop.permute.xlu0 %254
        %v256 = vlaneseq
        %v257 = vand.u32 %v256, 127
        %vm258 = vcmp.lt.s32.totalorder %v257, 127
        %v259 = vsel %vm258, %v241, %v249
        %v260 = vsel %vm258, %v243, %v251
        %v261 = vsel %vm258, %v245, %v253
        %v262 = vsel %vm258, %v247, %v255
        %v263 = vsel %vm258, %v233, %v241
        %v264 = vsel %vm258, %v235, %v243
        %v265 = vsel %vm258, %v237, %v245
        %v266 = vsel %vm258, %v239, %v247
        %v267 = vsel %vm258, %v225, %v233
        %v268 = vsel %vm258, %v227, %v235
        %v269 = vsel %vm258, %v229, %v237
        %v270 = vsel %vm258, %v231, %v239
        %v271 = vsel %vm258, %v249, %v225
        %v272 = vsel %vm258, %v251, %v227
        %v273 = vsel %vm258, %v253, %v229
        %v274 = vsel %vm258, %v255, %v231
        %s275 = scalar_lea.vmem [#allocation5], 32
        %v276 = vld [vmem:[%s275] sm:$0xff]
        %v277 = vld [vmem:[%s275 + $0x8] sm:$0xff]
        %v278 = vld [vmem:[%s275 + $0x10] sm:$0xff]
        %v279 = vld [vmem:[%s275 + $0x18] sm:$0xff]
        %vm280 = vcmask 261120
        %v282 = vsel %vm280, %v276, 0
        %v285 = vsel %vm280, %v277, 0
        %v288 = vsel %vm280, %v278, 0
        %v291 = vsel %vm280, %v279, 0
        %293 = vmatprep.subr.mxu0 0.0
        %294 = vmatpush1.msra.mxu0 0.0
        %295 = vmatprep.subr.mxu0 0.0
        %296 = vmatpush1.msra.mxu0 0.0
        %297 = vmatprep.subr.mxu0 0.0
        %298 = vmatpush1.msra.mxu0 0.0
        %299 = vmatprep.subr.mxu0 0.0
        %300 = vmatpush1.msra.mxu0 0.0
        %301 = vmatprep.subr.mxu0 0.0
        %302 = vmatpush1.msra.mxu0 0.0
        %303 = vmatprep.subr.mxu0 0.0
        %304 = vmatpush1.msra.mxu0 0.0
        %305 = vmatprep.subr.mxu0 0.0
        %306 = vmatpush1.msra.mxu0 0.0
        %307 = vmatprep.subr.mxu0 0.0
        %308 = vmatpush1.msra.mxu0 0.0
        %309 = vmatprep.subr.mxu0 0.0
        %310 = vmatpush1.msra.mxu0 0.0
        %311 = vmatprep.subr.mxu0 0.0
        %312 = vmatpush1.msra.mxu0 0.0
        %313 = vmatprep.subr.mxu0 0.0
        %314 = vmatpush1.msra.mxu0 0.0
        %315 = vmatprep.subr.mxu0 0.0
        %316 = vmatpush1.msra.mxu0 0.0
        %317 = vmatprep.subr.mxu0 %v266
        %318 = vmatpush1.msra.mxu0 %v270
        %319 = vmatprep.subr.mxu0 %v265
        %320 = vmatpush1.msra.mxu0 %v269
        %321 = vmatprep.subr.mxu0 %v264
        %322 = vmatpush1.msra.mxu0 %v268
        %323 = vmatprep.subr.mxu0 %v263
        %324 = vmatpush1.msra.mxu0 %v267
        %325 = vmatprep.subr.mxu0 0.0
        %326 = vmatpush2.msra.mxu0 0.0
        %327 = vmatprep.subr.mxu0 0.0
        %328 = vmatpush2.msra.mxu0 0.0
        %329 = vmatprep.subr.mxu0 0.0
        %330 = vmatpush2.msra.mxu0 0.0
        %331 = vmatprep.subr.mxu0 0.0
        %332 = vmatpush2.msra.mxu0 0.0
        %333 = vmatprep.subr.mxu0 0.0
        %334 = vmatpush2.msra.mxu0 0.0
        %335 = vmatprep.subr.mxu0 0.0
        %336 = vmatpush2.msra.mxu0 0.0
        %337 = vmatprep.subr.mxu0 0.0
        %338 = vmatpush2.msra.mxu0 0.0
        %339 = vmatprep.subr.mxu0 0.0
        %340 = vmatpush2.msra.mxu0 0.0
        %341 = vmatprep.subr.mxu0 0.0
        %342 = vmatpush2.msra.mxu0 0.0
        %343 = vmatprep.subr.mxu0 0.0
        %344 = vmatpush2.msra.mxu0 0.0
        %345 = vmatprep.subr.mxu0 0.0
        %346 = vmatpush2.msra.mxu0 0.0
        %347 = vmatprep.subr.mxu0 0.0
        %348 = vmatpush2.msra.mxu0 0.0
        %349 = vmatprep.subr.mxu0 0.0
        %350 = vmatpush2.msra.mxu0 0.0
        %351 = vmatprep.subr.mxu0 0.0
        %352 = vmatpush2.msra.mxu0 0.0
        %353 = vmatprep.subr.mxu0 0.0
        %354 = vmatpush2.msra.mxu0 0.0
        %355 = vmatprep.subr.mxu0 0.0
        %356 = vmatpush2.msra.mxu0 0.0
        %357 = vmatprep.mubr.f32.mxu0 0.0
        %358 = vmatmul.mubr.f32.gmra.mxu0 %v282
        %v359 = vpop.f32.mrf.mxu0
        %v360 = vadd.f32 0.0, %v359
        %v361 = vpop.f32.mrf.mxu0
        %v362 = vadd.f32 0.0, %v361
        %363 = vmatprep.mubr.f32.mxu0 0.0
        %364 = vmatmul.mubr.f32.gmra.mxu0 %v285
        %v365 = vpop.f32.mrf.mxu0
        %v366 = vadd.f32 0.0, %v365
        %v367 = vpop.f32.mrf.mxu0
        %v368 = vadd.f32 0.0, %v367
        %369 = vmatprep.mubr.f32.mxu0 0.0
        %370 = vmatmul.mubr.f32.gmra.mxu0 %v288
        %v371 = vpop.f32.mrf.mxu0
        %v372 = vadd.f32 0.0, %v371
        %v373 = vpop.f32.mrf.mxu0
        %v374 = vadd.f32 0.0, %v373
        %375 = vmatprep.mubr.f32.mxu0 0.0
        %376 = vmatmul.mubr.f32.gmra.mxu0 %v291
        %v377 = vpop.f32.mrf.mxu0
        %v378 = vadd.f32 0.0, %v377
        %v379 = vpop.f32.mrf.mxu0
        %v380 = vadd.f32 0.0, %v379
        %381 = vdwg.mxu0
        %382 = vmatprep.subr.mxu0 0.0
        %383 = vmatpush1.msra.mxu0 0.0
        %384 = vmatprep.subr.mxu0 0.0
        %385 = vmatpush1.msra.mxu0 0.0
        %386 = vmatprep.subr.mxu0 0.0
        %387 = vmatpush1.msra.mxu0 0.0
        %388 = vmatprep.subr.mxu0 0.0
        %389 = vmatpush1.msra.mxu0 0.0
        %390 = vmatprep.subr.mxu0 0.0
        %391 = vmatpush1.msra.mxu0 0.0
        %392 = vmatprep.subr.mxu0 0.0
        %393 = vmatpush1.msra.mxu0 0.0
        %394 = vmatprep.subr.mxu0 0.0
        %395 = vmatpush1.msra.mxu0 0.0
        %396 = vmatprep.subr.mxu0 0.0
        %397 = vmatpush1.msra.mxu0 0.0
        %398 = vmatprep.subr.mxu0 0.0
        %399 = vmatpush1.msra.mxu0 0.0
        %400 = vmatprep.subr.mxu0 0.0
        %401 = vmatpush1.msra.mxu0 0.0
        %402 = vmatprep.subr.mxu0 0.0
        %403 = vmatpush1.msra.mxu0 0.0
        %404 = vmatprep.subr.mxu0 0.0
        %405 = vmatpush1.msra.mxu0 0.0
        %406 = vmatprep.subr.mxu0 %v274
        %407 = vmatpush1.msra.mxu0 %v262
        %408 = vmatprep.subr.mxu0 %v273
        %409 = vmatpush1.msra.mxu0 %v261
        %410 = vmatprep.subr.mxu0 %v272
        %411 = vmatpush1.msra.mxu0 %v260
        %412 = vmatprep.subr.mxu0 %v271
        %413 = vmatpush1.msra.mxu0 %v259
        %414 = vmatprep.subr.mxu0 0.0
        %415 = vmatpush2.msra.mxu0 0.0
        %416 = vmatprep.subr.mxu0 0.0
        %417 = vmatpush2.msra.mxu0 0.0
        %418 = vmatprep.subr.mxu0 0.0
        %419 = vmatpush2.msra.mxu0 0.0
        %420 = vmatprep.subr.mxu0 0.0
        %421 = vmatpush2.msra.mxu0 0.0
        %422 = vmatprep.subr.mxu0 0.0
        %423 = vmatpush2.msra.mxu0 0.0
        %424 = vmatprep.subr.mxu0 0.0
        %425 = vmatpush2.msra.mxu0 0.0
        %426 = vmatprep.subr.mxu0 0.0
        %427 = vmatpush2.msra.mxu0 0.0
        %428 = vmatprep.subr.mxu0 0.0
        %429 = vmatpush2.msra.mxu0 0.0
        %430 = vmatprep.subr.mxu0 0.0
        %431 = vmatpush2.msra.mxu0 0.0
        %432 = vmatprep.subr.mxu0 0.0
        %433 = vmatpush2.msra.mxu0 0.0
        %434 = vmatprep.subr.mxu0 0.0
        %435 = vmatpush2.msra.mxu0 0.0
        %436 = vmatprep.subr.mxu0 0.0
        %437 = vmatpush2.msra.mxu0 0.0
        %438 = vmatprep.subr.mxu0 0.0
        %439 = vmatpush2.msra.mxu0 0.0
        %440 = vmatprep.subr.mxu0 0.0
        %441 = vmatpush2.msra.mxu0 0.0
        %442 = vmatprep.subr.mxu0 0.0
        %443 = vmatpush2.msra.mxu0 0.0
        %444 = vmatprep.subr.mxu0 0.0
        %445 = vmatpush2.msra.mxu0 0.0
        %446 = vmatprep.mubr.f32.mxu0 0.0
        %447 = vmatmul.mubr.f32.gmra.mxu0 %v282
        %v448 = vpop.f32.mrf.mxu0
        %v449 = vadd.f32 0.0, %v448
        %v450 = vpop.f32.mrf.mxu0
        %v451 = vadd.f32 0.0, %v450
        %452 = vmatprep.mubr.f32.mxu0 0.0
        %453 = vmatmul.mubr.f32.gmra.mxu0 %v285
        %v454 = vpop.f32.mrf.mxu0
        %v455 = vadd.f32 0.0, %v454
        %v456 = vpop.f32.mrf.mxu0
        %v457 = vadd.f32 0.0, %v456
        %458 = vmatprep.mubr.f32.mxu0 0.0
        %459 = vmatmul.mubr.f32.gmra.mxu0 %v288
        %v460 = vpop.f32.mrf.mxu0
        %v461 = vadd.f32 0.0, %v460
        %v462 = vpop.f32.mrf.mxu0
        %v463 = vadd.f32 0.0, %v462
        %464 = vmatprep.mubr.f32.mxu0 0.0
        %465 = vmatmul.mubr.f32.gmra.mxu0 %v291
        %v466 = vpop.f32.mrf.mxu0
        %v467 = vadd.f32 0.0, %v466
        %v468 = vpop.f32.mrf.mxu0
        %v469 = vadd.f32 0.0, %v468
        %470 = vdwg.mxu0
        %v472 = vsel %vm280, %v220, 0
        %v475 = vsel %vm280, %v221, 0
        %v478 = vsel %vm280, %v222, 0
        %v481 = vsel %vm280, %v223, 0
        %483 = vmatprep.subr.mxu0 0.0
        %484 = vmatpush1.msra.mxu0 0.0
        %485 = vmatprep.subr.mxu0 0.0
        %486 = vmatpush1.msra.mxu0 0.0
        %487 = vmatprep.subr.mxu0 0.0
        %488 = vmatpush1.msra.mxu0 0.0
        %489 = vmatprep.subr.mxu0 0.0
        %490 = vmatpush1.msra.mxu0 0.0
        %491 = vmatprep.subr.mxu0 0.0
        %492 = vmatpush1.msra.mxu0 0.0
        %493 = vmatprep.subr.mxu0 0.0
        %494 = vmatpush1.msra.mxu0 0.0
        %495 = vmatprep.subr.mxu0 0.0
        %496 = vmatpush1.msra.mxu0 0.0
        %497 = vmatprep.subr.mxu0 0.0
        %498 = vmatpush1.msra.mxu0 0.0
        %499 = vmatprep.subr.mxu0 0.0
        %500 = vmatpush1.msra.mxu0 0.0
        %501 = vmatprep.subr.mxu0 0.0
        %502 = vmatpush1.msra.mxu0 0.0
        %503 = vmatprep.subr.mxu0 0.0
        %504 = vmatpush1.msra.mxu0 0.0
        %505 = vmatprep.subr.mxu0 0.0
        %506 = vmatpush1.msra.mxu0 0.0
        %507 = vmatprep.subr.mxu0 %v217
        %508 = vmatpush1.msra.mxu0 %v216
        %509 = vmatprep.subr.mxu0 %v213
        %510 = vmatpush1.msra.mxu0 %v212
        %511 = vmatprep.subr.mxu0 %v209
        %512 = vmatpush1.msra.mxu0 %v208
        %513 = vmatprep.subr.mxu0 %v205
        %514 = vmatpush1.msra.mxu0 %v204
        %515 = vmatprep.subr.mxu0 0.0
        %516 = vmatpush2.msra.mxu0 0.0
        %517 = vmatprep.subr.mxu0 0.0
        %518 = vmatpush2.msra.mxu0 0.0
        %519 = vmatprep.subr.mxu0 0.0
        %520 = vmatpush2.msra.mxu0 0.0
        %521 = vmatprep.subr.mxu0 0.0
        %522 = vmatpush2.msra.mxu0 0.0
        %523 = vmatprep.subr.mxu0 0.0
        %524 = vmatpush2.msra.mxu0 0.0
        %525 = vmatprep.subr.mxu0 0.0
        %526 = vmatpush2.msra.mxu0 0.0
        %527 = vmatprep.subr.mxu0 0.0
        %528 = vmatpush2.msra.mxu0 0.0
        %529 = vmatprep.subr.mxu0 0.0
        %530 = vmatpush2.msra.mxu0 0.0
        %531 = vmatprep.subr.mxu0 0.0
        %532 = vmatpush2.msra.mxu0 0.0
        %533 = vmatprep.subr.mxu0 0.0
        %534 = vmatpush2.msra.mxu0 0.0
        %535 = vmatprep.subr.mxu0 0.0
        %536 = vmatpush2.msra.mxu0 0.0
        %537 = vmatprep.subr.mxu0 0.0
        %538 = vmatpush2.msra.mxu0 0.0
        %539 = vmatprep.subr.mxu0 0.0
        %540 = vmatpush2.msra.mxu0 0.0
        %541 = vmatprep.subr.mxu0 0.0
        %542 = vmatpush2.msra.mxu0 0.0
        %543 = vmatprep.subr.mxu0 0.0
        %544 = vmatpush2.msra.mxu0 0.0
        %545 = vmatprep.subr.mxu0 0.0
        %546 = vmatpush2.msra.mxu0 0.0
        %547 = vmatprep.mubr.f32.mxu0 0.0
        %548 = vmatmul.mubr.f32.gmra.mxu0 %v472
        %v549 = vpop.f32.mrf.mxu0
        %v550 = vadd.f32 %v360, %v549
        %v551 = vpop.f32.mrf.mxu0
        %v552 = vadd.f32 %v362, %v551
        %553 = vmatprep.mubr.f32.mxu0 0.0
        %554 = vmatmul.mubr.f32.gmra.mxu0 %v475
        %v555 = vpop.f32.mrf.mxu0
        %v556 = vadd.f32 %v366, %v555
        %v557 = vpop.f32.mrf.mxu0
        %v558 = vadd.f32 %v368, %v557
        %559 = vmatprep.mubr.f32.mxu0 0.0
        %560 = vmatmul.mubr.f32.gmra.mxu0 %v478
        %v561 = vpop.f32.mrf.mxu0
        %v562 = vadd.f32 %v372, %v561
        %v563 = vpop.f32.mrf.mxu0
        %v564 = vadd.f32 %v374, %v563
        %565 = vmatprep.mubr.f32.mxu0 0.0
        %566 = vmatmul.mubr.f32.gmra.mxu0 %v481
        %v567 = vpop.f32.mrf.mxu0
        %v568 = vadd.f32 %v378, %v567
        %v569 = vpop.f32.mrf.mxu0
        %v570 = vadd.f32 %v380, %v569
        %571 = vdwg.mxu0
        %572 = vmatprep.subr.mxu0 0.0
        %573 = vmatpush1.msra.mxu0 0.0
        %574 = vmatprep.subr.mxu0 0.0
        %575 = vmatpush1.msra.mxu0 0.0
        %576 = vmatprep.subr.mxu0 0.0
        %577 = vmatpush1.msra.mxu0 0.0
        %578 = vmatprep.subr.mxu0 0.0
        %579 = vmatpush1.msra.mxu0 0.0
        %580 = vmatprep.subr.mxu0 0.0
        %581 = vmatpush1.msra.mxu0 0.0
        %582 = vmatprep.subr.mxu0 0.0
        %583 = vmatpush1.msra.mxu0 0.0
        %584 = vmatprep.subr.mxu0 0.0
        %585 = vmatpush1.msra.mxu0 0.0
        %586 = vmatprep.subr.mxu0 0.0
        %587 = vmatpush1.msra.mxu0 0.0
        %588 = vmatprep.subr.mxu0 0.0
        %589 = vmatpush1.msra.mxu0 0.0
        %590 = vmatprep.subr.mxu0 0.0
        %591 = vmatpush1.msra.mxu0 0.0
        %592 = vmatprep.subr.mxu0 0.0
        %593 = vmatpush1.msra.mxu0 0.0
        %594 = vmatprep.subr.mxu0 0.0
        %595 = vmatpush1.msra.mxu0 0.0
        %596 = vmatprep.subr.mxu0 %v219
        %597 = vmatpush1.msra.mxu0 %v218
        %598 = vmatprep.subr.mxu0 %v215
        %599 = vmatpush1.msra.mxu0 %v214
        %600 = vmatprep.subr.mxu0 %v211
        %601 = vmatpush1.msra.mxu0 %v210
        %602 = vmatprep.subr.mxu0 %v207
        %603 = vmatpush1.msra.mxu0 %v206
        %604 = vmatprep.subr.mxu0 0.0
        %605 = vmatpush2.msra.mxu0 0.0
        %606 = vmatprep.subr.mxu0 0.0
        %607 = vmatpush2.msra.mxu0 0.0
        %608 = vmatprep.subr.mxu0 0.0
        %609 = vmatpush2.msra.mxu0 0.0
        %610 = vmatprep.subr.mxu0 0.0
        %611 = vmatpush2.msra.mxu0 0.0
        %612 = vmatprep.subr.mxu0 0.0
        %613 = vmatpush2.msra.mxu0 0.0
        %614 = vmatprep.subr.mxu0 0.0
        %615 = vmatpush2.msra.mxu0 0.0
        %616 = vmatprep.subr.mxu0 0.0
        %617 = vmatpush2.msra.mxu0 0.0
        %618 = vmatprep.subr.mxu0 0.0
        %619 = vmatpush2.msra.mxu0 0.0
        %620 = vmatprep.subr.mxu0 0.0
        %621 = vmatpush2.msra.mxu0 0.0
        %622 = vmatprep.subr.mxu0 0.0
        %623 = vmatpush2.msra.mxu0 0.0
        %624 = vmatprep.subr.mxu0 0.0
        %625 = vmatpush2.msra.mxu0 0.0
        %626 = vmatprep.subr.mxu0 0.0
        %627 = vmatpush2.msra.mxu0 0.0
        %628 = vmatprep.subr.mxu0 0.0
        %629 = vmatpush2.msra.mxu0 0.0
        %630 = vmatprep.subr.mxu0 0.0
        %631 = vmatpush2.msra.mxu0 0.0
        %632 = vmatprep.subr.mxu0 0.0
        %633 = vmatpush2.msra.mxu0 0.0
        %634 = vmatprep.subr.mxu0 0.0
        %635 = vmatpush2.msra.mxu0 0.0
        %636 = vmatprep.mubr.f32.mxu0 0.0
        %637 = vmatmul.mubr.f32.gmra.mxu0 %v472
        %v638 = vpop.f32.mrf.mxu0
        %v639 = vadd.f32 %v449, %v638
        %v640 = vpop.f32.mrf.mxu0
        %v641 = vadd.f32 %v451, %v640
        %642 = vmatprep.mubr.f32.mxu0 0.0
        %643 = vmatmul.mubr.f32.gmra.mxu0 %v475
        %v644 = vpop.f32.mrf.mxu0
        %v645 = vadd.f32 %v455, %v644
        %v646 = vpop.f32.mrf.mxu0
        %v647 = vadd.f32 %v457, %v646
        %648 = vmatprep.mubr.f32.mxu0 0.0
        %649 = vmatmul.mubr.f32.gmra.mxu0 %v478
        %v650 = vpop.f32.mrf.mxu0
        %v651 = vadd.f32 %v461, %v650
        %v652 = vpop.f32.mrf.mxu0
        %v653 = vadd.f32 %v463, %v652
        %654 = vmatprep.mubr.f32.mxu0 0.0
        %655 = vmatmul.mubr.f32.gmra.mxu0 %v481
        %v656 = vpop.f32.mrf.mxu0
        %v657 = vadd.f32 %v467, %v656
        %v658 = vpop.f32.mrf.mxu0
        %v659 = vadd.f32 %v469, %v658
        %660 = vdwg.mxu0
        %v661 = vld [vmem:[%s2] sm:$0xff]
        %v662 = vld [vmem:[%s2 + $0x8] sm:$0xff]
        %v663 = vld [vmem:[%s2 + $0x10] sm:$0xff]
        %v664 = vld [vmem:[%s2 + $0x18] sm:$0xff]
        %666 = vset.pattern.permute.xlu0 0
        %667 = vperm.xlu0 %666, %v661
        %v668 = vpop.permute.xlu0 %667
        %671 = vset.pattern.permute.xlu0 0
        %672 = vperm.xlu0 %671, %v662
        %v673 = vpop.permute.xlu0 %672
        %676 = vset.pattern.permute.xlu0 0
        %677 = vperm.xlu0 %676, %v663
        %v678 = vpop.permute.xlu0 %677
        %681 = vset.pattern.permute.xlu0 0
        %682 = vperm.xlu0 %681, %v664
        %v683 = vpop.permute.xlu0 %682
        %v685 = vadd.f32 %v550, %v668
        %v686 = vadd.f32 %v552, %v668
        %v687 = vadd.f32 %v639, %v668
        %v688 = vadd.f32 %v641, %v668
        %v689 = vadd.f32 %v556, %v673
        %v690 = vadd.f32 %v558, %v673
        %v691 = vadd.f32 %v645, %v673
        %v692 = vadd.f32 %v647, %v673
        %v693 = vadd.f32 %v562, %v678
        %v694 = vadd.f32 %v564, %v678
        %v695 = vadd.f32 %v651, %v678
        %v696 = vadd.f32 %v653, %v678
        %v697 = vadd.f32 %v568, %v683
        %v698 = vadd.f32 %v570, %v683
        %v699 = vadd.f32 %v657, %v683
        %v700 = vadd.f32 %v659, %v683
        %v701 = vadd.f32 %v685, %v204
        %v702 = vadd.f32 %v686, %v205
        %v703 = vadd.f32 %v687, %v206
        %v704 = vadd.f32 %v688, %v207
        %v705 = vadd.f32 %v689, %v208
        %v706 = vadd.f32 %v690, %v209
        %v707 = vadd.f32 %v691, %v210
        %v708 = vadd.f32 %v692, %v211
        %v709 = vadd.f32 %v693, %v212
        %v710 = vadd.f32 %v694, %v213
        %v711 = vadd.f32 %v695, %v214
        %v712 = vadd.f32 %v696, %v215
        %v713 = vadd.f32 %v697, %v216
        %v714 = vadd.f32 %v698, %v217
        %v715 = vadd.f32 %v699, %v218
        %v716 = vadd.f32 %v700, %v219
        %s717 = scalar_lea.vmem [#allocation5], 64
        %v718 = vld [vmem:[%s717] sm:$0xff]
        %v719 = vld [vmem:[%s717 + $0x8] sm:$0xff]
        %v720 = vld [vmem:[%s717 + $0x10] sm:$0xff]
        %v721 = vld [vmem:[%s717 + $0x18] sm:$0xff]
        %722 = vrot.lane.b32.xlu0 %v701, 126
        %v723 = vpop.permute.xlu0 %722
        %724 = vrot.lane.b32.xlu0 %v705, 126
        %v725 = vpop.permute.xlu0 %724
        %726 = vrot.lane.b32.xlu0 %v709, 126
        %v727 = vpop.permute.xlu0 %726
        %728 = vrot.lane.b32.xlu0 %v713, 126
        %v729 = vpop.permute.xlu0 %728
        %730 = vrot.lane.b32.xlu0 %v702, 126
        %v731 = vpop.permute.xlu0 %730
        %732 = vrot.lane.b32.xlu0 %v706, 126
        %v733 = vpop.permute.xlu0 %732
        %734 = vrot.lane.b32.xlu0 %v710, 126
        %v735 = vpop.permute.xlu0 %734
        %736 = vrot.lane.b32.xlu0 %v714, 126
        %v737 = vpop.permute.xlu0 %736
        %738 = vrot.lane.b32.xlu0 %v703, 126
        %v739 = vpop.permute.xlu0 %738
        %740 = vrot.lane.b32.xlu0 %v707, 126
        %v741 = vpop.permute.xlu0 %740
        %742 = vrot.lane.b32.xlu0 %v711, 126
        %v743 = vpop.permute.xlu0 %742
        %744 = vrot.lane.b32.xlu0 %v715, 126
        %v745 = vpop.permute.xlu0 %744
        %746 = vrot.lane.b32.xlu0 %v704, 126
        %v747 = vpop.permute.xlu0 %746
        %748 = vrot.lane.b32.xlu0 %v708, 126
        %v749 = vpop.permute.xlu0 %748
        %750 = vrot.lane.b32.xlu0 %v712, 126
        %v751 = vpop.permute.xlu0 %750
        %752 = vrot.lane.b32.xlu0 %v716, 126
        %v753 = vpop.permute.xlu0 %752
        %vm754 = vcmp.lt.s32.totalorder %v257, 126
        %v755 = vsel %vm754, %v739, %v747
        %v756 = vsel %vm754, %v741, %v749
        %v757 = vsel %vm754, %v743, %v751
        %v758 = vsel %vm754, %v745, %v753
        %v759 = vsel %vm754, %v731, %v739
        %v760 = vsel %vm754, %v733, %v741
        %v761 = vsel %vm754, %v735, %v743
        %v762 = vsel %vm754, %v737, %v745
        %v763 = vsel %vm754, %v723, %v731
        %v764 = vsel %vm754, %v725, %v733
        %v765 = vsel %vm754, %v727, %v735
        %v766 = vsel %vm754, %v729, %v737
        %v767 = vsel %vm754, %v747, %v723
        %v768 = vsel %vm754, %v749, %v725
        %v769 = vsel %vm754, %v751, %v727
        %v770 = vsel %vm754, %v753, %v729
        %s771 = scalar_lea.vmem [#allocation5], 96
        %v772 = vld [vmem:[%s771] sm:$0xff]
        %v773 = vld [vmem:[%s771 + $0x8] sm:$0xff]
        %v774 = vld [vmem:[%s771 + $0x10] sm:$0xff]
        %v775 = vld [vmem:[%s771 + $0x18] sm:$0xff]
        %v777 = vsel %vm280, %v772, 0
        %v780 = vsel %vm280, %v773, 0
        %v783 = vsel %vm280, %v774, 0
        %v786 = vsel %vm280, %v775, 0
        %788 = vmatprep.subr.mxu0 0.0
        %789 = vmatpush1.msra.mxu0 0.0
        %790 = vmatprep.subr.mxu0 0.0
        %791 = vmatpush1.msra.mxu0 0.0
        %792 = vmatprep.subr.mxu0 0.0
        %793 = vmatpush1.msra.mxu0 0.0
        %794 = vmatprep.subr.mxu0 0.0
        %795 = vmatpush1.msra.mxu0 0.0
        %796 = vmatprep.subr.mxu0 0.0
        %797 = vmatpush1.msra.mxu0 0.0
        %798 = vmatprep.subr.mxu0 0.0
        %799 = vmatpush1.msra.mxu0 0.0
        %800 = vmatprep.subr.mxu0 0.0
        %801 = vmatpush1.msra.mxu0 0.0
        %802 = vmatprep.subr.mxu0 0.0
        %803 = vmatpush1.msra.mxu0 0.0
        %804 = vmatprep.subr.mxu0 0.0
        %805 = vmatpush1.msra.mxu0 0.0
        %806 = vmatprep.subr.mxu0 0.0
        %807 = vmatpush1.msra.mxu0 0.0
        %808 = vmatprep.subr.mxu0 0.0
        %809 = vmatpush1.msra.mxu0 0.0
        %810 = vmatprep.subr.mxu0 0.0
        %811 = vmatpush1.msra.mxu0 0.0
        %812 = vmatprep.subr.mxu0 %v762
        %813 = vmatpush1.msra.mxu0 %v766
        %814 = vmatprep.subr.mxu0 %v761
        %815 = vmatpush1.msra.mxu0 %v765
        %816 = vmatprep.subr.mxu0 %v760
        %817 = vmatpush1.msra.mxu0 %v764
        %818 = vmatprep.subr.mxu0 %v759
        %819 = vmatpush1.msra.mxu0 %v763
        %820 = vmatprep.subr.mxu0 0.0
        %821 = vmatpush2.msra.mxu0 0.0
        %822 = vmatprep.subr.mxu0 0.0
        %823 = vmatpush2.msra.mxu0 0.0
        %824 = vmatprep.subr.mxu0 0.0
        %825 = vmatpush2.msra.mxu0 0.0
        %826 = vmatprep.subr.mxu0 0.0
        %827 = vmatpush2.msra.mxu0 0.0
        %828 = vmatprep.subr.mxu0 0.0
        %829 = vmatpush2.msra.mxu0 0.0
        %830 = vmatprep.subr.mxu0 0.0
        %831 = vmatpush2.msra.mxu0 0.0
        %832 = vmatprep.subr.mxu0 0.0
        %833 = vmatpush2.msra.mxu0 0.0
        %834 = vmatprep.subr.mxu0 0.0
        %835 = vmatpush2.msra.mxu0 0.0
        %836 = vmatprep.subr.mxu0 0.0
        %837 = vmatpush2.msra.mxu0 0.0
        %838 = vmatprep.subr.mxu0 0.0
        %839 = vmatpush2.msra.mxu0 0.0
        %840 = vmatprep.subr.mxu0 0.0
        %841 = vmatpush2.msra.mxu0 0.0
        %842 = vmatprep.subr.mxu0 0.0
        %843 = vmatpush2.msra.mxu0 0.0
        %844 = vmatprep.subr.mxu0 0.0
        %845 = vmatpush2.msra.mxu0 0.0
        %846 = vmatprep.subr.mxu0 0.0
        %847 = vmatpush2.msra.mxu0 0.0
        %848 = vmatprep.subr.mxu0 0.0
        %849 = vmatpush2.msra.mxu0 0.0
        %850 = vmatprep.subr.mxu0 0.0
        %851 = vmatpush2.msra.mxu0 0.0
        %852 = vmatprep.mubr.f32.mxu0 0.0
        %853 = vmatmul.mubr.f32.gmra.mxu0 %v777
        %v854 = vpop.f32.mrf.mxu0
        %v855 = vadd.f32 0.0, %v854
        %v856 = vpop.f32.mrf.mxu0
        %v857 = vadd.f32 0.0, %v856
        %858 = vmatprep.mubr.f32.mxu0 0.0
        %859 = vmatmul.mubr.f32.gmra.mxu0 %v780
        %v860 = vpop.f32.mrf.mxu0
        %v861 = vadd.f32 0.0, %v860
        %v862 = vpop.f32.mrf.mxu0
        %v863 = vadd.f32 0.0, %v862
        %864 = vmatprep.mubr.f32.mxu0 0.0
        %865 = vmatmul.mubr.f32.gmra.mxu0 %v783
        %v866 = vpop.f32.mrf.mxu0
        %v867 = vadd.f32 0.0, %v866
        %v868 = vpop.f32.mrf.mxu0
        %v869 = vadd.f32 0.0, %v868
        %870 = vmatprep.mubr.f32.mxu0 0.0
        %871 = vmatmul.mubr.f32.gmra.mxu0 %v786
        %v872 = vpop.f32.mrf.mxu0
        %v873 = vadd.f32 0.0, %v872
        %v874 = vpop.f32.mrf.mxu0
        %v875 = vadd.f32 0.0, %v874
        %876 = vdwg.mxu0
        %877 = vmatprep.subr.mxu0 0.0
        %878 = vmatpush1.msra.mxu0 0.0
        %879 = vmatprep.subr.mxu0 0.0
        %880 = vmatpush1.msra.mxu0 0.0
        %881 = vmatprep.subr.mxu0 0.0
        %882 = vmatpush1.msra.mxu0 0.0
        %883 = vmatprep.subr.mxu0 0.0
        %884 = vmatpush1.msra.mxu0 0.0
        %885 = vmatprep.subr.mxu0 0.0
        %886 = vmatpush1.msra.mxu0 0.0
        %887 = vmatprep.subr.mxu0 0.0
        %888 = vmatpush1.msra.mxu0 0.0
        %889 = vmatprep.subr.mxu0 0.0
        %890 = vmatpush1.msra.mxu0 0.0
        %891 = vmatprep.subr.mxu0 0.0
        %892 = vmatpush1.msra.mxu0 0.0
        %893 = vmatprep.subr.mxu0 0.0
        %894 = vmatpush1.msra.mxu0 0.0
        %895 = vmatprep.subr.mxu0 0.0
        %896 = vmatpush1.msra.mxu0 0.0
        %897 = vmatprep.subr.mxu0 0.0
        %898 = vmatpush1.msra.mxu0 0.0
        %899 = vmatprep.subr.mxu0 0.0
        %900 = vmatpush1.msra.mxu0 0.0
        %901 = vmatprep.subr.mxu0 %v770
        %902 = vmatpush1.msra.mxu0 %v758
        %903 = vmatprep.subr.mxu0 %v769
        %904 = vmatpush1.msra.mxu0 %v757
        %905 = vmatprep.subr.mxu0 %v768
        %906 = vmatpush1.msra.mxu0 %v756
        %907 = vmatprep.subr.mxu0 %v767
        %908 = vmatpush1.msra.mxu0 %v755
        %909 = vmatprep.subr.mxu0 0.0
        %910 = vmatpush2.msra.mxu0 0.0
        %911 = vmatprep.subr.mxu0 0.0
        %912 = vmatpush2.msra.mxu0 0.0
        %913 = vmatprep.subr.mxu0 0.0
        %914 = vmatpush2.msra.mxu0 0.0
        %915 = vmatprep.subr.mxu0 0.0
        %916 = vmatpush2.msra.mxu0 0.0
        %917 = vmatprep.subr.mxu0 0.0
        %918 = vmatpush2.msra.mxu0 0.0
        %919 = vmatprep.subr.mxu0 0.0
        %920 = vmatpush2.msra.mxu0 0.0
        %921 = vmatprep.subr.mxu0 0.0
        %922 = vmatpush2.msra.mxu0 0.0
        %923 = vmatprep.subr.mxu0 0.0
        %924 = vmatpush2.msra.mxu0 0.0
        %925 = vmatprep.subr.mxu0 0.0
        %926 = vmatpush2.msra.mxu0 0.0
        %927 = vmatprep.subr.mxu0 0.0
        %928 = vmatpush2.msra.mxu0 0.0
        %929 = vmatprep.subr.mxu0 0.0
        %930 = vmatpush2.msra.mxu0 0.0
        %931 = vmatprep.subr.mxu0 0.0
        %932 = vmatpush2.msra.mxu0 0.0
        %933 = vmatprep.subr.mxu0 0.0
        %934 = vmatpush2.msra.mxu0 0.0
        %935 = vmatprep.subr.mxu0 0.0
        %936 = vmatpush2.msra.mxu0 0.0
        %937 = vmatprep.subr.mxu0 0.0
        %938 = vmatpush2.msra.mxu0 0.0
        %939 = vmatprep.subr.mxu0 0.0
        %940 = vmatpush2.msra.mxu0 0.0
        %941 = vmatprep.mubr.f32.mxu0 0.0
        %942 = vmatmul.mubr.f32.gmra.mxu0 %v777
        %v943 = vpop.f32.mrf.mxu0
        %v944 = vadd.f32 0.0, %v943
        %v945 = vpop.f32.mrf.mxu0
        %v946 = vadd.f32 0.0, %v945
        %947 = vmatprep.mubr.f32.mxu0 0.0
        %948 = vmatmul.mubr.f32.gmra.mxu0 %v780
        %v949 = vpop.f32.mrf.mxu0
        %v950 = vadd.f32 0.0, %v949
        %v951 = vpop.f32.mrf.mxu0
        %v952 = vadd.f32 0.0, %v951
        %953 = vmatprep.mubr.f32.mxu0 0.0
        %954 = vmatmul.mubr.f32.gmra.mxu0 %v783
        %v955 = vpop.f32.mrf.mxu0
        %v956 = vadd.f32 0.0, %v955
        %v957 = vpop.f32.mrf.mxu0
        %v958 = vadd.f32 0.0, %v957
        %959 = vmatprep.mubr.f32.mxu0 0.0
        %960 = vmatmul.mubr.f32.gmra.mxu0 %v786
        %v961 = vpop.f32.mrf.mxu0
        %v962 = vadd.f32 0.0, %v961
        %v963 = vpop.f32.mrf.mxu0
        %v964 = vadd.f32 0.0, %v963
        %965 = vdwg.mxu0
        %v967 = vsel %vm280, %v718, 0
        %v970 = vsel %vm280, %v719, 0
        %v973 = vsel %vm280, %v720, 0
        %v976 = vsel %vm280, %v721, 0
        %978 = vmatprep.subr.mxu0 0.0
        %979 = vmatpush1.msra.mxu0 0.0
        %980 = vmatprep.subr.mxu0 0.0
        %981 = vmatpush1.msra.mxu0 0.0
        %982 = vmatprep.subr.mxu0 0.0
        %983 = vmatpush1.msra.mxu0 0.0
        %984 = vmatprep.subr.mxu0 0.0
        %985 = vmatpush1.msra.mxu0 0.0
        %986 = vmatprep.subr.mxu0 0.0
        %987 = vmatpush1.msra.mxu0 0.0
        %988 = vmatprep.subr.mxu0 0.0
        %989 = vmatpush1.msra.mxu0 0.0
        %990 = vmatprep.subr.mxu0 0.0
        %991 = vmatpush1.msra.mxu0 0.0
        %992 = vmatprep.subr.mxu0 0.0
        %993 = vmatpush1.msra.mxu0 0.0
        %994 = vmatprep.subr.mxu0 0.0
        %995 = vmatpush1.msra.mxu0 0.0
        %996 = vmatprep.subr.mxu0 0.0
        %997 = vmatpush1.msra.mxu0 0.0
        %998 = vmatprep.subr.mxu0 0.0
        %999 = vmatpush1.msra.mxu0 0.0
        %1000 = vmatprep.subr.mxu0 0.0
        %1001 = vmatpush1.msra.mxu0 0.0
        %1002 = vmatprep.subr.mxu0 %v714
        %1003 = vmatpush1.msra.mxu0 %v713
        %1004 = vmatprep.subr.mxu0 %v710
        %1005 = vmatpush1.msra.mxu0 %v709
        %1006 = vmatprep.subr.mxu0 %v706
        %1007 = vmatpush1.msra.mxu0 %v705
        %1008 = vmatprep.subr.mxu0 %v702
        %1009 = vmatpush1.msra.mxu0 %v701
        %1010 = vmatprep.subr.mxu0 0.0
        %1011 = vmatpush2.msra.mxu0 0.0
        %1012 = vmatprep.subr.mxu0 0.0
        %1013 = vmatpush2.msra.mxu0 0.0
        %1014 = vmatprep.subr.mxu0 0.0
        %1015 = vmatpush2.msra.mxu0 0.0
        %1016 = vmatprep.subr.mxu0 0.0
        %1017 = vmatpush2.msra.mxu0 0.0
        %1018 = vmatprep.subr.mxu0 0.0
        %1019 = vmatpush2.msra.mxu0 0.0
        %1020 = vmatprep.subr.mxu0 0.0
        %1021 = vmatpush2.msra.mxu0 0.0
        %1022 = vmatprep.subr.mxu0 0.0
        %1023 = vmatpush2.msra.mxu0 0.0
        %1024 = vmatprep.subr.mxu0 0.0
        %1025 = vmatpush2.msra.mxu0 0.0
        %1026 = vmatprep.subr.mxu0 0.0
        %1027 = vmatpush2.msra.mxu0 0.0
        %1028 = vmatprep.subr.mxu0 0.0
        %1029 = vmatpush2.msra.mxu0 0.0
        %1030 = vmatprep.subr.mxu0 0.0
        %1031 = vmatpush2.msra.mxu0 0.0
        %1032 = vmatprep.subr.mxu0 0.0
        %1033 = vmatpush2.msra.mxu0 0.0
        %1034 = vmatprep.subr.mxu0 0.0
        %1035 = vmatpush2.msra.mxu0 0.0
        %1036 = vmatprep.subr.mxu0 0.0
        %1037 = vmatpush2.msra.mxu0 0.0
        %1038 = vmatprep.subr.mxu0 0.0
        %1039 = vmatpush2.msra.mxu0 0.0
        %1040 = vmatprep.subr.mxu0 0.0
        %1041 = vmatpush2.msra.mxu0 0.0
        %1042 = vmatprep.mubr.f32.mxu0 0.0
        %1043 = vmatmul.mubr.f32.gmra.mxu0 %v967
        %v1044 = vpop.f32.mrf.mxu0
        %v1045 = vadd.f32 %v855, %v1044
        %v1046 = vpop.f32.mrf.mxu0
        %v1047 = vadd.f32 %v857, %v1046
        %1048 = vmatprep.mubr.f32.mxu0 0.0
        %1049 = vmatmul.mubr.f32.gmra.mxu0 %v970
        %v1050 = vpop.f32.mrf.mxu0
        %v1051 = vadd.f32 %v861, %v1050
        %v1052 = vpop.f32.mrf.mxu0
        %v1053 = vadd.f32 %v863, %v1052
        %1054 = vmatprep.mubr.f32.mxu0 0.0
        %1055 = vmatmul.mubr.f32.gmra.mxu0 %v973
        %v1056 = vpop.f32.mrf.mxu0
        %v1057 = vadd.f32 %v867, %v1056
        %v1058 = vpop.f32.mrf.mxu0
        %v1059 = vadd.f32 %v869, %v1058
        %1060 = vmatprep.mubr.f32.mxu0 0.0
        %1061 = vmatmul.mubr.f32.gmra.mxu0 %v976
        %v1062 = vpop.f32.mrf.mxu0
        %v1063 = vadd.f32 %v873, %v1062
        %v1064 = vpop.f32.mrf.mxu0
        %v1065 = vadd.f32 %v875, %v1064
        %1066 = vdwg.mxu0
        %1067 = vmatprep.subr.mxu0 0.0
        %1068 = vmatpush1.msra.mxu0 0.0
        %1069 = vmatprep.subr.mxu0 0.0
        %1070 = vmatpush1.msra.mxu0 0.0
        %1071 = vmatprep.subr.mxu0 0.0
        %1072 = vmatpush1.msra.mxu0 0.0
        %1073 = vmatprep.subr.mxu0 0.0
        %1074 = vmatpush1.msra.mxu0 0.0
        %1075 = vmatprep.subr.mxu0 0.0
        %1076 = vmatpush1.msra.mxu0 0.0
        %1077 = vmatprep.subr.mxu0 0.0
        %1078 = vmatpush1.msra.mxu0 0.0
        %1079 = vmatprep.subr.mxu0 0.0
        %1080 = vmatpush1.msra.mxu0 0.0
        %1081 = vmatprep.subr.mxu0 0.0
        %1082 = vmatpush1.msra.mxu0 0.0
        %1083 = vmatprep.subr.mxu0 0.0
        %1084 = vmatpush1.msra.mxu0 0.0
        %1085 = vmatprep.subr.mxu0 0.0
        %1086 = vmatpush1.msra.mxu0 0.0
        %1087 = vmatprep.subr.mxu0 0.0
        %1088 = vmatpush1.msra.mxu0 0.0
        %1089 = vmatprep.subr.mxu0 0.0
        %1090 = vmatpush1.msra.mxu0 0.0
        %1091 = vmatprep.subr.mxu0 %v716
        %1092 = vmatpush1.msra.mxu0 %v715
        %1093 = vmatprep.subr.mxu0 %v712
        %1094 = vmatpush1.msra.mxu0 %v711
        %1095 = vmatprep.subr.mxu0 %v708
        %1096 = vmatpush1.msra.mxu0 %v707
        %1097 = vmatprep.subr.mxu0 %v704
        %1098 = vmatpush1.msra.mxu0 %v703
        %1099 = vmatprep.subr.mxu0 0.0
        %1100 = vmatpush2.msra.mxu0 0.0
        %1101 = vmatprep.subr.mxu0 0.0
        %1102 = vmatpush2.msra.mxu0 0.0
        %1103 = vmatprep.subr.mxu0 0.0
        %1104 = vmatpush2.msra.mxu0 0.0
        %1105 = vmatprep.subr.mxu0 0.0
        %1106 = vmatpush2.msra.mxu0 0.0
        %1107 = vmatprep.subr.mxu0 0.0
        %1108 = vmatpush2.msra.mxu0 0.0
        %1109 = vmatprep.subr.mxu0 0.0
        %1110 = vmatpush2.msra.mxu0 0.0
        %1111 = vmatprep.subr.mxu0 0.0
        %1112 = vmatpush2.msra.mxu0 0.0
        %1113 = vmatprep.subr.mxu0 0.0
        %1114 = vmatpush2.msra.mxu0 0.0
        %1115 = vmatprep.subr.mxu0 0.0
        %1116 = vmatpush2.msra.mxu0 0.0
        %1117 = vmatprep.subr.mxu0 0.0
        %1118 = vmatpush2.msra.mxu0 0.0
        %1119 = vmatprep.subr.mxu0 0.0
        %1120 = vmatpush2.msra.mxu0 0.0
        %1121 = vmatprep.subr.mxu0 0.0
        %1122 = vmatpush2.msra.mxu0 0.0
        %1123 = vmatprep.subr.mxu0 0.0
        %1124 = vmatpush2.msra.mxu0 0.0
        %1125 = vmatprep.subr.mxu0 0.0
        %1126 = vmatpush2.msra.mxu0 0.0
        %1127 = vmatprep.subr.mxu0 0.0
        %1128 = vmatpush2.msra.mxu0 0.0
        %1129 = vmatprep.subr.mxu0 0.0
        %1130 = vmatpush2.msra.mxu0 0.0
        %1131 = vmatprep.mubr.f32.mxu0 0.0
        %1132 = vmatmul.mubr.f32.gmra.mxu0 %v967
        %v1133 = vpop.f32.mrf.mxu0
        %v1134 = vadd.f32 %v944, %v1133
        %v1135 = vpop.f32.mrf.mxu0
        %v1136 = vadd.f32 %v946, %v1135
        %1137 = vmatprep.mubr.f32.mxu0 0.0
        %1138 = vmatmul.mubr.f32.gmra.mxu0 %v970
        %v1139 = vpop.f32.mrf.mxu0
        %v1140 = vadd.f32 %v950, %v1139
        %v1141 = vpop.f32.mrf.mxu0
        %v1142 = vadd.f32 %v952, %v1141
        %1143 = vmatprep.mubr.f32.mxu0 0.0
        %1144 = vmatmul.mubr.f32.gmra.mxu0 %v973
        %v1145 = vpop.f32.mrf.mxu0
        %v1146 = vadd.f32 %v956, %v1145
        %v1147 = vpop.f32.mrf.mxu0
        %v1148 = vadd.f32 %v958, %v1147
        %1149 = vmatprep.mubr.f32.mxu0 0.0
        %1150 = vmatmul.mubr.f32.gmra.mxu0 %v976
        %v1151 = vpop.f32.mrf.mxu0
        %v1152 = vadd.f32 %v962, %v1151
        %v1153 = vpop.f32.mrf.mxu0
        %v1154 = vadd.f32 %v964, %v1153
        %1155 = vdwg.mxu0
        %s1156 = scalar_lea.vmem %s2, 32
        %v1157 = vld [vmem:[%s1156] sm:$0xff]
        %v1158 = vld [vmem:[%s1156 + $0x8] sm:$0xff]
        %v1159 = vld [vmem:[%s1156 + $0x10] sm:$0xff]
        %v1160 = vld [vmem:[%s1156 + $0x18] sm:$0xff]
        %1162 = vset.pattern.permute.xlu0 0
        %1163 = vperm.xlu0 %1162, %v1157
        %v1164 = vpop.permute.xlu0 %1163
        %1167 = vset.pattern.permute.xlu0 0
        %1168 = vperm.xlu0 %1167, %v1158
        %v1169 = vpop.permute.xlu0 %1168
        %1172 = vset.pattern.permute.xlu0 0
        %1173 = vperm.xlu0 %1172, %v1159
        %v1174 = vpop.permute.xlu0 %1173
        %1177 = vset.pattern.permute.xlu0 0
        %1178 = vperm.xlu0 %1177, %v1160
        %v1179 = vpop.permute.xlu0 %1178
        %v1181 = vadd.f32 %v1045, %v1164
        %v1182 = vadd.f32 %v1047, %v1164
        %v1183 = vadd.f32 %v1134, %v1164
        %v1184 = vadd.f32 %v1136, %v1164
        %v1185 = vadd.f32 %v1051, %v1169
        %v1186 = vadd.f32 %v1053, %v1169
        %v1187 = vadd.f32 %v1140, %v1169
        %v1188 = vadd.f32 %v1142, %v1169
        %v1189 = vadd.f32 %v1057, %v1174
        %v1190 = vadd.f32 %v1059, %v1174
        %v1191 = vadd.f32 %v1146, %v1174
        %v1192 = vadd.f32 %v1148, %v1174
        %v1193 = vadd.f32 %v1063, %v1179
        %v1194 = vadd.f32 %v1065, %v1179
        %v1195 = vadd.f32 %v1152, %v1179
        %v1196 = vadd.f32 %v1154, %v1179
        %v1197 = vadd.f32 %v1181, %v701
        %v1198 = vadd.f32 %v1182, %v702
        %v1199 = vadd.f32 %v1183, %v703
        %v1200 = vadd.f32 %v1184, %v704
        %v1201 = vadd.f32 %v1185, %v705
        %v1202 = vadd.f32 %v1186, %v706
        %v1203 = vadd.f32 %v1187, %v707
        %v1204 = vadd.f32 %v1188, %v708
        %v1205 = vadd.f32 %v1189, %v709
        %v1206 = vadd.f32 %v1190, %v710
        %v1207 = vadd.f32 %v1191, %v711
        %v1208 = vadd.f32 %v1192, %v712
        %v1209 = vadd.f32 %v1193, %v713
        %v1210 = vadd.f32 %v1194, %v714
        %v1211 = vadd.f32 %v1195, %v715
        %v1212 = vadd.f32 %v1196, %v716
        %s1213 = scalar_lea.vmem [#allocation5], 128
        %v1214 = vld [vmem:[%s1213] sm:$0xff]
        %v1215 = vld [vmem:[%s1213 + $0x8] sm:$0xff]
        %v1216 = vld [vmem:[%s1213 + $0x10] sm:$0xff]
        %v1217 = vld [vmem:[%s1213 + $0x18] sm:$0xff]
        %1218 = vrot.lane.b32.xlu0 %v1197, 124
        %v1219 = vpop.permute.xlu0 %1218
        %1220 = vrot.lane.b32.xlu0 %v1201, 124
        %v1221 = vpop.permute.xlu0 %1220
        %1222 = vrot.lane.b32.xlu0 %v1205, 124
        %v1223 = vpop.permute.xlu0 %1222
        %1224 = vrot.lane.b32.xlu0 %v1209, 124
        %v1225 = vpop.permute.xlu0 %1224
        %1226 = vrot.lane.b32.xlu0 %v1198, 124
        %v1227 = vpop.permute.xlu0 %1226
        %1228 = vrot.lane.b32.xlu0 %v1202, 124
        %v1229 = vpop.permute.xlu0 %1228
        %1230 = vrot.lane.b32.xlu0 %v1206, 124
        %v1231 = vpop.permute.xlu0 %1230
        %1232 = vrot.lane.b32.xlu0 %v1210, 124
        %v1233 = vpop.permute.xlu0 %1232
        %1234 = vrot.lane.b32.xlu0 %v1199, 124
        %v1235 = vpop.permute.xlu0 %1234
        %1236 = vrot.lane.b32.xlu0 %v1203, 124
        %v1237 = vpop.permute.xlu0 %1236
        %1238 = vrot.lane.b32.xlu0 %v1207, 124
        %v1239 = vpop.permute.xlu0 %1238
        %1240 = vrot.lane.b32.xlu0 %v1211, 124
        %v1241 = vpop.permute.xlu0 %1240
        %1242 = vrot.lane.b32.xlu0 %v1200, 124
        %v1243 = vpop.permute.xlu0 %1242
        %1244 = vrot.lane.b32.xlu0 %v1204, 124
        %v1245 = vpop.permute.xlu0 %1244
        %1246 = vrot.lane.b32.xlu0 %v1208, 124
        %v1247 = vpop.permute.xlu0 %1246
        %1248 = vrot.lane.b32.xlu0 %v1212, 124
        %v1249 = vpop.permute.xlu0 %1248
        %vm1250 = vcmp.lt.s32.totalorder %v257, 124
        %v1251 = vsel %vm1250, %v1235, %v1243
        %v1252 = vsel %vm1250, %v1237, %v1245
        %v1253 = vsel %vm1250, %v1239, %v1247
        %v1254 = vsel %vm1250, %v1241, %v1249
        %v1255 = vsel %vm1250, %v1227, %v1235
        %v1256 = vsel %vm1250, %v1229, %v1237
        %v1257 = vsel %vm1250, %v1231, %v1239
        %v1258 = vsel %vm1250, %v1233, %v1241
        %v1259 = vsel %vm1250, %v1219, %v1227
        %v1260 = vsel %vm1250, %v1221, %v1229
        %v1261 = vsel %vm1250, %v1223, %v1231
        %v1262 = vsel %vm1250, %v1225, %v1233
        %v1263 = vsel %vm1250, %v1243, %v1219
        %v1264 = vsel %vm1250, %v1245, %v1221
        %v1265 = vsel %vm1250, %v1247, %v1223
        %v1266 = vsel %vm1250, %v1249, %v1225
        %s1267 = scalar_lea.vmem [#allocation5], 160
        %v1268 = vld [vmem:[%s1267] sm:$0xff]
        %v1269 = vld [vmem:[%s1267 + $0x8] sm:$0xff]
        %v1270 = vld [vmem:[%s1267 + $0x10] sm:$0xff]
        %v1271 = vld [vmem:[%s1267 + $0x18] sm:$0xff]
        %v1273 = vsel %vm280, %v1268, 0
        %v1276 = vsel %vm280, %v1269, 0
        %v1279 = vsel %vm280, %v1270, 0
        %v1282 = vsel %vm280, %v1271, 0
        %1284 = vmatprep.subr.mxu0 0.0
        %1285 = vmatpush1.msra.mxu0 0.0
        %1286 = vmatprep.subr.mxu0 0.0
        %1287 = vmatpush1.msra.mxu0 0.0
        %1288 = vmatprep.subr.mxu0 0.0
        %1289 = vmatpush1.msra.mxu0 0.0
        %1290 = vmatprep.subr.mxu0 0.0
        %1291 = vmatpush1.msra.mxu0 0.0
        %1292 = vmatprep.subr.mxu0 0.0
        %1293 = vmatpush1.msra.mxu0 0.0
        %1294 = vmatprep.subr.mxu0 0.0
        %1295 = vmatpush1.msra.mxu0 0.0
        %1296 = vmatprep.subr.mxu0 0.0
        %1297 = vmatpush1.msra.mxu0 0.0
        %1298 = vmatprep.subr.mxu0 0.0
        %1299 = vmatpush1.msra.mxu0 0.0
        %1300 = vmatprep.subr.mxu0 0.0
        %1301 = vmatpush1.msra.mxu0 0.0
        %1302 = vmatprep.subr.mxu0 0.0
        %1303 = vmatpush1.msra.mxu0 0.0
        %1304 = vmatprep.subr.mxu0 0.0
        %1305 = vmatpush1.msra.mxu0 0.0
        %1306 = vmatprep.subr.mxu0 0.0
        %1307 = vmatpush1.msra.mxu0 0.0
        %1308 = vmatprep.subr.mxu0 %v1258
        %1309 = vmatpush1.msra.mxu0 %v1262
        %1310 = vmatprep.subr.mxu0 %v1257
        %1311 = vmatpush1.msra.mxu0 %v1261
        %1312 = vmatprep.subr.mxu0 %v1256
        %1313 = vmatpush1.msra.mxu0 %v1260
        %1314 = vmatprep.subr.mxu0 %v1255
        %1315 = vmatpush1.msra.mxu0 %v1259
        %1316 = vmatprep.subr.mxu0 0.0
        %1317 = vmatpush2.msra.mxu0 0.0
        %1318 = vmatprep.subr.mxu0 0.0
        %1319 = vmatpush2.msra.mxu0 0.0
        %1320 = vmatprep.subr.mxu0 0.0
        %1321 = vmatpush2.msra.mxu0 0.0
        %1322 = vmatprep.subr.mxu0 0.0
        %1323 = vmatpush2.msra.mxu0 0.0
        %1324 = vmatprep.subr.mxu0 0.0
        %1325 = vmatpush2.msra.mxu0 0.0
        %1326 = vmatprep.subr.mxu0 0.0
        %1327 = vmatpush2.msra.mxu0 0.0
        %1328 = vmatprep.subr.mxu0 0.0
        %1329 = vmatpush2.msra.mxu0 0.0
        %1330 = vmatprep.subr.mxu0 0.0
        %1331 = vmatpush2.msra.mxu0 0.0
        %1332 = vmatprep.subr.mxu0 0.0
        %1333 = vmatpush2.msra.mxu0 0.0
        %1334 = vmatprep.subr.mxu0 0.0
        %1335 = vmatpush2.msra.mxu0 0.0
        %1336 = vmatprep.subr.mxu0 0.0
        %1337 = vmatpush2.msra.mxu0 0.0
        %1338 = vmatprep.subr.mxu0 0.0
        %1339 = vmatpush2.msra.mxu0 0.0
        %1340 = vmatprep.subr.mxu0 0.0
        %1341 = vmatpush2.msra.mxu0 0.0
        %1342 = vmatprep.subr.mxu0 0.0
        %1343 = vmatpush2.msra.mxu0 0.0
        %1344 = vmatprep.subr.mxu0 0.0
        %1345 = vmatpush2.msra.mxu0 0.0
        %1346 = vmatprep.subr.mxu0 0.0
        %1347 = vmatpush2.msra.mxu0 0.0
        %1348 = vmatprep.mubr.f32.mxu0 0.0
        %1349 = vmatmul.mubr.f32.gmra.mxu0 %v1273
        %v1350 = vpop.f32.mrf.mxu0
        %v1351 = vadd.f32 0.0, %v1350
        %v1352 = vpop.f32.mrf.mxu0
        %v1353 = vadd.f32 0.0, %v1352
        %1354 = vmatprep.mubr.f32.mxu0 0.0
        %1355 = vmatmul.mubr.f32.gmra.mxu0 %v1276
        %v1356 = vpop.f32.mrf.mxu0
        %v1357 = vadd.f32 0.0, %v1356
        %v1358 = vpop.f32.mrf.mxu0
        %v1359 = vadd.f32 0.0, %v1358
        %1360 = vmatprep.mubr.f32.mxu0 0.0
        %1361 = vmatmul.mubr.f32.gmra.mxu0 %v1279
        %v1362 = vpop.f32.mrf.mxu0
        %v1363 = vadd.f32 0.0, %v1362
        %v1364 = vpop.f32.mrf.mxu0
        %v1365 = vadd.f32 0.0, %v1364
        %1366 = vmatprep.mubr.f32.mxu0 0.0
        %1367 = vmatmul.mubr.f32.gmra.mxu0 %v1282
        %v1368 = vpop.f32.mrf.mxu0
        %v1369 = vadd.f32 0.0, %v1368
        %v1370 = vpop.f32.mrf.mxu0
        %v1371 = vadd.f32 0.0, %v1370
        %1372 = vdwg.mxu0
        %1373 = vmatprep.subr.mxu0 0.0
        %1374 = vmatpush1.msra.mxu0 0.0
        %1375 = vmatprep.subr.mxu0 0.0
        %1376 = vmatpush1.msra.mxu0 0.0
        %1377 = vmatprep.subr.mxu0 0.0
        %1378 = vmatpush1.msra.mxu0 0.0
        %1379 = vmatprep.subr.mxu0 0.0
        %1380 = vmatpush1.msra.mxu0 0.0
        %1381 = vmatprep.subr.mxu0 0.0
        %1382 = vmatpush1.msra.mxu0 0.0
        %1383 = vmatprep.subr.mxu0 0.0
        %1384 = vmatpush1.msra.mxu0 0.0
        %1385 = vmatprep.subr.mxu0 0.0
        %1386 = vmatpush1.msra.mxu0 0.0
        %1387 = vmatprep.subr.mxu0 0.0
        %1388 = vmatpush1.msra.mxu0 0.0
        %1389 = vmatprep.subr.mxu0 0.0
        %1390 = vmatpush1.msra.mxu0 0.0
        %1391 = vmatprep.subr.mxu0 0.0
        %1392 = vmatpush1.msra.mxu0 0.0
        %1393 = vmatprep.subr.mxu0 0.0
        %1394 = vmatpush1.msra.mxu0 0.0
        %1395 = vmatprep.subr.mxu0 0.0
        %1396 = vmatpush1.msra.mxu0 0.0
        %1397 = vmatprep.subr.mxu0 %v1266
        %1398 = vmatpush1.msra.mxu0 %v1254
        %1399 = vmatprep.subr.mxu0 %v1265
        %1400 = vmatpush1.msra.mxu0 %v1253
        %1401 = vmatprep.subr.mxu0 %v1264
        %1402 = vmatpush1.msra.mxu0 %v1252
        %1403 = vmatprep.subr.mxu0 %v1263
        %1404 = vmatpush1.msra.mxu0 %v1251
        %1405 = vmatprep.subr.mxu0 0.0
        %1406 = vmatpush2.msra.mxu0 0.0
        %1407 = vmatprep.subr.mxu0 0.0
        %1408 = vmatpush2.msra.mxu0 0.0
        %1409 = vmatprep.subr.mxu0 0.0
        %1410 = vmatpush2.msra.mxu0 0.0
        %1411 = vmatprep.subr.mxu0 0.0
        %1412 = vmatpush2.msra.mxu0 0.0
        %1413 = vmatprep.subr.mxu0 0.0
        %1414 = vmatpush2.msra.mxu0 0.0
        %1415 = vmatprep.subr.mxu0 0.0
        %1416 = vmatpush2.msra.mxu0 0.0
        %1417 = vmatprep.subr.mxu0 0.0
        %1418 = vmatpush2.msra.mxu0 0.0
        %1419 = vmatprep.subr.mxu0 0.0
        %1420 = vmatpush2.msra.mxu0 0.0
        %1421 = vmatprep.subr.mxu0 0.0
        %1422 = vmatpush2.msra.mxu0 0.0
        %1423 = vmatprep.subr.mxu0 0.0
        %1424 = vmatpush2.msra.mxu0 0.0
        %1425 = vmatprep.subr.mxu0 0.0
        %1426 = vmatpush2.msra.mxu0 0.0
        %1427 = vmatprep.subr.mxu0 0.0
        %1428 = vmatpush2.msra.mxu0 0.0
        %1429 = vmatprep.subr.mxu0 0.0
        %1430 = vmatpush2.msra.mxu0 0.0
        %1431 = vmatprep.subr.mxu0 0.0
        %1432 = vmatpush2.msra.mxu0 0.0
        %1433 = vmatprep.subr.mxu0 0.0
        %1434 = vmatpush2.msra.mxu0 0.0
        %1435 = vmatprep.subr.mxu0 0.0
        %1436 = vmatpush2.msra.mxu0 0.0
        %1437 = vmatprep.mubr.f32.mxu0 0.0
        %1438 = vmatmul.mubr.f32.gmra.mxu0 %v1273
        %v1439 = vpop.f32.mrf.mxu0
        %v1440 = vadd.f32 0.0, %v1439
        %v1441 = vpop.f32.mrf.mxu0
        %v1442 = vadd.f32 0.0, %v1441
        %1443 = vmatprep.mubr.f32.mxu0 0.0
        %1444 = vmatmul.mubr.f32.gmra.mxu0 %v1276
        %v1445 = vpop.f32.mrf.mxu0
        %v1446 = vadd.f32 0.0, %v1445
        %v1447 = vpop.f32.mrf.mxu0
        %v1448 = vadd.f32 0.0, %v1447
        %1449 = vmatprep.mubr.f32.mxu0 0.0
        %1450 = vmatmul.mubr.f32.gmra.mxu0 %v1279
        %v1451 = vpop.f32.mrf.mxu0
        %v1452 = vadd.f32 0.0, %v1451
        %v1453 = vpop.f32.mrf.mxu0
        %v1454 = vadd.f32 0.0, %v1453
        %1455 = vmatprep.mubr.f32.mxu0 0.0
        %1456 = vmatmul.mubr.f32.gmra.mxu0 %v1282
        %v1457 = vpop.f32.mrf.mxu0
        %v1458 = vadd.f32 0.0, %v1457
        %v1459 = vpop.f32.mrf.mxu0
        %v1460 = vadd.f32 0.0, %v1459
        %1461 = vdwg.mxu0
        %v1463 = vsel %vm280, %v1214, 0
        %v1466 = vsel %vm280, %v1215, 0
        %v1469 = vsel %vm280, %v1216, 0
        %v1472 = vsel %vm280, %v1217, 0
        %1474 = vmatprep.subr.mxu0 0.0
        %1475 = vmatpush1.msra.mxu0 0.0
        %1476 = vmatprep.subr.mxu0 0.0
        %1477 = vmatpush1.msra.mxu0 0.0
        %1478 = vmatprep.subr.mxu0 0.0
        %1479 = vmatpush1.msra.mxu0 0.0
        %1480 = vmatprep.subr.mxu0 0.0
        %1481 = vmatpush1.msra.mxu0 0.0
        %1482 = vmatprep.subr.mxu0 0.0
        %1483 = vmatpush1.msra.mxu0 0.0
        %1484 = vmatprep.subr.mxu0 0.0
        %1485 = vmatpush1.msra.mxu0 0.0
        %1486 = vmatprep.subr.mxu0 0.0
        %1487 = vmatpush1.msra.mxu0 0.0
        %1488 = vmatprep.subr.mxu0 0.0
        %1489 = vmatpush1.msra.mxu0 0.0
        %1490 = vmatprep.subr.mxu0 0.0
        %1491 = vmatpush1.msra.mxu0 0.0
        %1492 = vmatprep.subr.mxu0 0.0
        %1493 = vmatpush1.msra.mxu0 0.0
        %1494 = vmatprep.subr.mxu0 0.0
        %1495 = vmatpush1.msra.mxu0 0.0
        %1496 = vmatprep.subr.mxu0 0.0
        %1497 = vmatpush1.msra.mxu0 0.0
        %1498 = vmatprep.subr.mxu0 %v1210
        %1499 = vmatpush1.msra.mxu0 %v1209
        %1500 = vmatprep.subr.mxu0 %v1206
        %1501 = vmatpush1.msra.mxu0 %v1205
        %1502 = vmatprep.subr.mxu0 %v1202
        %1503 = vmatpush1.msra.mxu0 %v1201
        %1504 = vmatprep.subr.mxu0 %v1198
        %1505 = vmatpush1.msra.mxu0 %v1197
        %1506 = vmatprep.subr.mxu0 0.0
        %1507 = vmatpush2.msra.mxu0 0.0
        %1508 = vmatprep.subr.mxu0 0.0
        %1509 = vmatpush2.msra.mxu0 0.0
        %1510 = vmatprep.subr.mxu0 0.0
        %1511 = vmatpush2.msra.mxu0 0.0
        %1512 = vmatprep.subr.mxu0 0.0
        %1513 = vmatpush2.msra.mxu0 0.0
        %1514 = vmatprep.subr.mxu0 0.0
        %1515 = vmatpush2.msra.mxu0 0.0
        %1516 = vmatprep.subr.mxu0 0.0
        %1517 = vmatpush2.msra.mxu0 0.0
        %1518 = vmatprep.subr.mxu0 0.0
        %1519 = vmatpush2.msra.mxu0 0.0
        %1520 = vmatprep.subr.mxu0 0.0
        %1521 = vmatpush2.msra.mxu0 0.0
        %1522 = vmatprep.subr.mxu0 0.0
        %1523 = vmatpush2.msra.mxu0 0.0
        %1524 = vmatprep.subr.mxu0 0.0
        %1525 = vmatpush2.msra.mxu0 0.0
        %1526 = vmatprep.subr.mxu0 0.0
        %1527 = vmatpush2.msra.mxu0 0.0
        %1528 = vmatprep.subr.mxu0 0.0
        %1529 = vmatpush2.msra.mxu0 0.0
        %1530 = vmatprep.subr.mxu0 0.0
        %1531 = vmatpush2.msra.mxu0 0.0
        %1532 = vmatprep.subr.mxu0 0.0
        %1533 = vmatpush2.msra.mxu0 0.0
        %1534 = vmatprep.subr.mxu0 0.0
        %1535 = vmatpush2.msra.mxu0 0.0
        %1536 = vmatprep.subr.mxu0 0.0
        %1537 = vmatpush2.msra.mxu0 0.0
        %1538 = vmatprep.mubr.f32.mxu0 0.0
        %1539 = vmatmul.mubr.f32.gmra.mxu0 %v1463
        %v1540 = vpop.f32.mrf.mxu0
        %v1541 = vadd.f32 %v1351, %v1540
        %v1542 = vpop.f32.mrf.mxu0
        %v1543 = vadd.f32 %v1353, %v1542
        %1544 = vmatprep.mubr.f32.mxu0 0.0
        %1545 = vmatmul.mubr.f32.gmra.mxu0 %v1466
        %v1546 = vpop.f32.mrf.mxu0
        %v1547 = vadd.f32 %v1357, %v1546
        %v1548 = vpop.f32.mrf.mxu0
        %v1549 = vadd.f32 %v1359, %v1548
        %1550 = vmatprep.mubr.f32.mxu0 0.0
        %1551 = vmatmul.mubr.f32.gmra.mxu0 %v1469
        %v1552 = vpop.f32.mrf.mxu0
        %v1553 = vadd.f32 %v1363, %v1552
        %v1554 = vpop.f32.mrf.mxu0
        %v1555 = vadd.f32 %v1365, %v1554
        %1556 = vmatprep.mubr.f32.mxu0 0.0
        %1557 = vmatmul.mubr.f32.gmra.mxu0 %v1472
        %v1558 = vpop.f32.mrf.mxu0
        %v1559 = vadd.f32 %v1369, %v1558
        %v1560 = vpop.f32.mrf.mxu0
        %v1561 = vadd.f32 %v1371, %v1560
        %1562 = vdwg.mxu0
        %1563 = vmatprep.subr.mxu0 0.0
        %1564 = vmatpush1.msra.mxu0 0.0
        %1565 = vmatprep.subr.mxu0 0.0
        %1566 = vmatpush1.msra.mxu0 0.0
        %1567 = vmatprep.subr.mxu0 0.0
        %1568 = vmatpush1.msra.mxu0 0.0
        %1569 = vmatprep.subr.mxu0 0.0
        %1570 = vmatpush1.msra.mxu0 0.0
        %1571 = vmatprep.subr.mxu0 0.0
        %1572 = vmatpush1.msra.mxu0 0.0
        %1573 = vmatprep.subr.mxu0 0.0
        %1574 = vmatpush1.msra.mxu0 0.0
        %1575 = vmatprep.subr.mxu0 0.0
        %1576 = vmatpush1.msra.mxu0 0.0
        %1577 = vmatprep.subr.mxu0 0.0
        %1578 = vmatpush1.msra.mxu0 0.0
        %1579 = vmatprep.subr.mxu0 0.0
        %1580 = vmatpush1.msra.mxu0 0.0
        %1581 = vmatprep.subr.mxu0 0.0
        %1582 = vmatpush1.msra.mxu0 0.0
        %1583 = vmatprep.subr.mxu0 0.0
        %1584 = vmatpush1.msra.mxu0 0.0
        %1585 = vmatprep.subr.mxu0 0.0
        %1586 = vmatpush1.msra.mxu0 0.0
        %1587 = vmatprep.subr.mxu0 %v1212
        %1588 = vmatpush1.msra.mxu0 %v1211
        %1589 = vmatprep.subr.mxu0 %v1208
        %1590 = vmatpush1.msra.mxu0 %v1207
        %1591 = vmatprep.subr.mxu0 %v1204
        %1592 = vmatpush1.msra.mxu0 %v1203
        %1593 = vmatprep.subr.mxu0 %v1200
        %1594 = vmatpush1.msra.mxu0 %v1199
        %1595 = vmatprep.subr.mxu0 0.0
        %1596 = vmatpush2.msra.mxu0 0.0
        %1597 = vmatprep.subr.mxu0 0.0
        %1598 = vmatpush2.msra.mxu0 0.0
        %1599 = vmatprep.subr.mxu0 0.0
        %1600 = vmatpush2.msra.mxu0 0.0
        %1601 = vmatprep.subr.mxu0 0.0
        %1602 = vmatpush2.msra.mxu0 0.0
        %1603 = vmatprep.subr.mxu0 0.0
        %1604 = vmatpush2.msra.mxu0 0.0
        %1605 = vmatprep.subr.mxu0 0.0
        %1606 = vmatpush2.msra.mxu0 0.0
        %1607 = vmatprep.subr.mxu0 0.0
        %1608 = vmatpush2.msra.mxu0 0.0
        %1609 = vmatprep.subr.mxu0 0.0
        %1610 = vmatpush2.msra.mxu0 0.0
        %1611 = vmatprep.subr.mxu0 0.0
        %1612 = vmatpush2.msra.mxu0 0.0
        %1613 = vmatprep.subr.mxu0 0.0
        %1614 = vmatpush2.msra.mxu0 0.0
        %1615 = vmatprep.subr.mxu0 0.0
        %1616 = vmatpush2.msra.mxu0 0.0
        %1617 = vmatprep.subr.mxu0 0.0
        %1618 = vmatpush2.msra.mxu0 0.0
        %1619 = vmatprep.subr.mxu0 0.0
        %1620 = vmatpush2.msra.mxu0 0.0
        %1621 = vmatprep.subr.mxu0 0.0
        %1622 = vmatpush2.msra.mxu0 0.0
        %1623 = vmatprep.subr.mxu0 0.0
        %1624 = vmatpush2.msra.mxu0 0.0
        %1625 = vmatprep.subr.mxu0 0.0
        %1626 = vmatpush2.msra.mxu0 0.0
        %1627 = vmatprep.mubr.f32.mxu0 0.0
        %1628 = vmatmul.mubr.f32.gmra.mxu0 %v1463
        %v1629 = vpop.f32.mrf.mxu0
        %v1630 = vadd.f32 %v1440, %v1629
        %v1631 = vpop.f32.mrf.mxu0
        %v1632 = vadd.f32 %v1442, %v1631
        %1633 = vmatprep.mubr.f32.mxu0 0.0
        %1634 = vmatmul.mubr.f32.gmra.mxu0 %v1466
        %v1635 = vpop.f32.mrf.mxu0
        %v1636 = vadd.f32 %v1446, %v1635
        %v1637 = vpop.f32.mrf.mxu0
        %v1638 = vadd.f32 %v1448, %v1637
        %1639 = vmatprep.mubr.f32.mxu0 0.0
        %1640 = vmatmul.mubr.f32.gmra.mxu0 %v1469
        %v1641 = vpop.f32.mrf.mxu0
        %v1642 = vadd.f32 %v1452, %v1641
        %v1643 = vpop.f32.mrf.mxu0
        %v1644 = vadd.f32 %v1454, %v1643
        %1645 = vmatprep.mubr.f32.mxu0 0.0
        %1646 = vmatmul.mubr.f32.gmra.mxu0 %v1472
        %v1647 = vpop.f32.mrf.mxu0
        %v1648 = vadd.f32 %v1458, %v1647
        %v1649 = vpop.f32.mrf.mxu0
        %v1650 = vadd.f32 %v1460, %v1649
        %1651 = vdwg.mxu0
        %s1652 = scalar_lea.vmem %s2, 64
        %v1653 = vld [vmem:[%s1652] sm:$0xff]
        %v1654 = vld [vmem:[%s1652 + $0x8] sm:$0xff]
        %v1655 = vld [vmem:[%s1652 + $0x10] sm:$0xff]
        %v1656 = vld [vmem:[%s1652 + $0x18] sm:$0xff]
        %1658 = vset.pattern.permute.xlu0 0
        %1659 = vperm.xlu0 %1658, %v1653
        %v1660 = vpop.permute.xlu0 %1659
        %1663 = vset.pattern.permute.xlu0 0
        %1664 = vperm.xlu0 %1663, %v1654
        %v1665 = vpop.permute.xlu0 %1664
        %1668 = vset.pattern.permute.xlu0 0
        %1669 = vperm.xlu0 %1668, %v1655
        %v1670 = vpop.permute.xlu0 %1669
        %1673 = vset.pattern.permute.xlu0 0
        %1674 = vperm.xlu0 %1673, %v1656
        %v1675 = vpop.permute.xlu0 %1674
        %v1677 = vadd.f32 %v1541, %v1660
        %v1678 = vadd.f32 %v1543, %v1660
        %v1679 = vadd.f32 %v1630, %v1660
        %v1680 = vadd.f32 %v1632, %v1660
        %v1681 = vadd.f32 %v1547, %v1665
        %v1682 = vadd.f32 %v1549, %v1665
        %v1683 = vadd.f32 %v1636, %v1665
        %v1684 = vadd.f32 %v1638, %v1665
        %v1685 = vadd.f32 %v1553, %v1670
        %v1686 = vadd.f32 %v1555, %v1670
        %v1687 = vadd.f32 %v1642, %v1670
        %v1688 = vadd.f32 %v1644, %v1670
        %v1689 = vadd.f32 %v1559, %v1675
        %v1690 = vadd.f32 %v1561, %v1675
        %v1691 = vadd.f32 %v1648, %v1675
        %v1692 = vadd.f32 %v1650, %v1675
        %v1693 = vadd.f32 %v1677, %v1197
        %v1694 = vadd.f32 %v1678, %v1198
        %v1695 = vadd.f32 %v1679, %v1199
        %v1696 = vadd.f32 %v1680, %v1200
        %v1697 = vadd.f32 %v1681, %v1201
        %v1698 = vadd.f32 %v1682, %v1202
        %v1699 = vadd.f32 %v1683, %v1203
        %v1700 = vadd.f32 %v1684, %v1204
        %v1701 = vadd.f32 %v1685, %v1205
        %v1702 = vadd.f32 %v1686, %v1206
        %v1703 = vadd.f32 %v1687, %v1207
        %v1704 = vadd.f32 %v1688, %v1208
        %v1705 = vadd.f32 %v1689, %v1209
        %v1706 = vadd.f32 %v1690, %v1210
        %v1707 = vadd.f32 %v1691, %v1211
        %v1708 = vadd.f32 %v1692, %v1212
        %s1709 = scalar_lea.vmem [#allocation5], 192
        %v1710 = vld [vmem:[%s1709] sm:$0xff]
        %v1711 = vld [vmem:[%s1709 + $0x8] sm:$0xff]
        %v1712 = vld [vmem:[%s1709 + $0x10] sm:$0xff]
        %v1713 = vld [vmem:[%s1709 + $0x18] sm:$0xff]
        %1714 = vrot.lane.b32.xlu0 %v1693, 120
        %v1715 = vpop.permute.xlu0 %1714
        %1716 = vrot.lane.b32.xlu0 %v1697, 120
        %v1717 = vpop.permute.xlu0 %1716
        %1718 = vrot.lane.b32.xlu0 %v1701, 120
        %v1719 = vpop.permute.xlu0 %1718
        %1720 = vrot.lane.b32.xlu0 %v1705, 120
        %v1721 = vpop.permute.xlu0 %1720
        %1722 = vrot.lane.b32.xlu0 %v1694, 120
        %v1723 = vpop.permute.xlu0 %1722
        %1724 = vrot.lane.b32.xlu0 %v1698, 120
        %v1725 = vpop.permute.xlu0 %1724
        %1726 = vrot.lane.b32.xlu0 %v1702, 120
        %v1727 = vpop.permute.xlu0 %1726
        %1728 = vrot.lane.b32.xlu0 %v1706, 120
        %v1729 = vpop.permute.xlu0 %1728
        %1730 = vrot.lane.b32.xlu0 %v1695, 120
        %v1731 = vpop.permute.xlu0 %1730
        %1732 = vrot.lane.b32.xlu0 %v1699, 120
        %v1733 = vpop.permute.xlu0 %1732
        %1734 = vrot.lane.b32.xlu0 %v1703, 120
        %v1735 = vpop.permute.xlu0 %1734
        %1736 = vrot.lane.b32.xlu0 %v1707, 120
        %v1737 = vpop.permute.xlu0 %1736
        %1738 = vrot.lane.b32.xlu0 %v1696, 120
        %v1739 = vpop.permute.xlu0 %1738
        %1740 = vrot.lane.b32.xlu0 %v1700, 120
        %v1741 = vpop.permute.xlu0 %1740
        %1742 = vrot.lane.b32.xlu0 %v1704, 120
        %v1743 = vpop.permute.xlu0 %1742
        %1744 = vrot.lane.b32.xlu0 %v1708, 120
        %v1745 = vpop.permute.xlu0 %1744
        %vm1746 = vcmp.lt.s32.totalorder %v257, 120
        %v1747 = vsel %vm1746, %v1731, %v1739
        %v1748 = vsel %vm1746, %v1733, %v1741
        %v1749 = vsel %vm1746, %v1735, %v1743
        %v1750 = vsel %vm1746, %v1737, %v1745
        %v1751 = vsel %vm1746, %v1723, %v1731
        %v1752 = vsel %vm1746, %v1725, %v1733
        %v1753 = vsel %vm1746, %v1727, %v1735
        %v1754 = vsel %vm1746, %v1729, %v1737
        %v1755 = vsel %vm1746, %v1715, %v1723
        %v1756 = vsel %vm1746, %v1717, %v1725
        %v1757 = vsel %vm1746, %v1719, %v1727
        %v1758 = vsel %vm1746, %v1721, %v1729
        %v1759 = vsel %vm1746, %v1739, %v1715
        %v1760 = vsel %vm1746, %v1741, %v1717
        %v1761 = vsel %vm1746, %v1743, %v1719
        %v1762 = vsel %vm1746, %v1745, %v1721
        %s1763 = scalar_lea.vmem [#allocation5], 224
        %v1764 = vld [vmem:[%s1763] sm:$0xff]
        %v1765 = vld [vmem:[%s1763 + $0x8] sm:$0xff]
        %v1766 = vld [vmem:[%s1763 + $0x10] sm:$0xff]
        %v1767 = vld [vmem:[%s1763 + $0x18] sm:$0xff]
        %v1769 = vsel %vm280, %v1764, 0
        %v1772 = vsel %vm280, %v1765, 0
        %v1775 = vsel %vm280, %v1766, 0
        %v1778 = vsel %vm280, %v1767, 0
        %1780 = vmatprep.subr.mxu0 0.0
        %1781 = vmatpush1.msra.mxu0 0.0
        %1782 = vmatprep.subr.mxu0 0.0
        %1783 = vmatpush1.msra.mxu0 0.0
        %1784 = vmatprep.subr.mxu0 0.0
        %1785 = vmatpush1.msra.mxu0 0.0
        %1786 = vmatprep.subr.mxu0 0.0
        %1787 = vmatpush1.msra.mxu0 0.0
        %1788 = vmatprep.subr.mxu0 0.0
        %1789 = vmatpush1.msra.mxu0 0.0
        %1790 = vmatprep.subr.mxu0 0.0
        %1791 = vmatpush1.msra.mxu0 0.0
        %1792 = vmatprep.subr.mxu0 0.0
        %1793 = vmatpush1.msra.mxu0 0.0
        %1794 = vmatprep.subr.mxu0 0.0
        %1795 = vmatpush1.msra.mxu0 0.0
        %1796 = vmatprep.subr.mxu0 0.0
        %1797 = vmatpush1.msra.mxu0 0.0
        %1798 = vmatprep.subr.mxu0 0.0
        %1799 = vmatpush1.msra.mxu0 0.0
        %1800 = vmatprep.subr.mxu0 0.0
        %1801 = vmatpush1.msra.mxu0 0.0
        %1802 = vmatprep.subr.mxu0 0.0
        %1803 = vmatpush1.msra.mxu0 0.0
        %1804 = vmatprep.subr.mxu0 %v1754
        %1805 = vmatpush1.msra.mxu0 %v1758
        %1806 = vmatprep.subr.mxu0 %v1753
        %1807 = vmatpush1.msra.mxu0 %v1757
        %1808 = vmatprep.subr.mxu0 %v1752
        %1809 = vmatpush1.msra.mxu0 %v1756
        %1810 = vmatprep.subr.mxu0 %v1751
        %1811 = vmatpush1.msra.mxu0 %v1755
        %1812 = vmatprep.subr.mxu0 0.0
        %1813 = vmatpush2.msra.mxu0 0.0
        %1814 = vmatprep.subr.mxu0 0.0
        %1815 = vmatpush2.msra.mxu0 0.0
        %1816 = vmatprep.subr.mxu0 0.0
        %1817 = vmatpush2.msra.mxu0 0.0
        %1818 = vmatprep.subr.mxu0 0.0
        %1819 = vmatpush2.msra.mxu0 0.0
        %1820 = vmatprep.subr.mxu0 0.0
        %1821 = vmatpush2.msra.mxu0 0.0
        %1822 = vmatprep.subr.mxu0 0.0
        %1823 = vmatpush2.msra.mxu0 0.0
        %1824 = vmatprep.subr.mxu0 0.0
        %1825 = vmatpush2.msra.mxu0 0.0
        %1826 = vmatprep.subr.mxu0 0.0
        %1827 = vmatpush2.msra.mxu0 0.0
        %1828 = vmatprep.subr.mxu0 0.0
        %1829 = vmatpush2.msra.mxu0 0.0
        %1830 = vmatprep.subr.mxu0 0.0
        %1831 = vmatpush2.msra.mxu0 0.0
        %1832 = vmatprep.subr.mxu0 0.0
        %1833 = vmatpush2.msra.mxu0 0.0
        %1834 = vmatprep.subr.mxu0 0.0
        %1835 = vmatpush2.msra.mxu0 0.0
        %1836 = vmatprep.subr.mxu0 0.0
        %1837 = vmatpush2.msra.mxu0 0.0
        %1838 = vmatprep.subr.mxu0 0.0
        %1839 = vmatpush2.msra.mxu0 0.0
        %1840 = vmatprep.subr.mxu0 0.0
        %1841 = vmatpush2.msra.mxu0 0.0
        %1842 = vmatprep.subr.mxu0 0.0
        %1843 = vmatpush2.msra.mxu0 0.0
        %1844 = vmatprep.mubr.f32.mxu0 0.0
        %1845 = vmatmul.mubr.f32.gmra.mxu0 %v1769
        %v1846 = vpop.f32.mrf.mxu0
        %v1847 = vadd.f32 0.0, %v1846
        %v1848 = vpop.f32.mrf.mxu0
        %v1849 = vadd.f32 0.0, %v1848
        %1850 = vmatprep.mubr.f32.mxu0 0.0
        %1851 = vmatmul.mubr.f32.gmra.mxu0 %v1772
        %v1852 = vpop.f32.mrf.mxu0
        %v1853 = vadd.f32 0.0, %v1852
        %v1854 = vpop.f32.mrf.mxu0
        %v1855 = vadd.f32 0.0, %v1854
        %1856 = vmatprep.mubr.f32.mxu0 0.0
        %1857 = vmatmul.mubr.f32.gmra.mxu0 %v1775
        %v1858 = vpop.f32.mrf.mxu0
        %v1859 = vadd.f32 0.0, %v1858
        %v1860 = vpop.f32.mrf.mxu0
        %v1861 = vadd.f32 0.0, %v1860
        %1862 = vmatprep.mubr.f32.mxu0 0.0
        %1863 = vmatmul.mubr.f32.gmra.mxu0 %v1778
        %v1864 = vpop.f32.mrf.mxu0
        %v1865 = vadd.f32 0.0, %v1864
        %v1866 = vpop.f32.mrf.mxu0
        %v1867 = vadd.f32 0.0, %v1866
        %1868 = vdwg.mxu0
        %1869 = vmatprep.subr.mxu0 0.0
        %1870 = vmatpush1.msra.mxu0 0.0
        %1871 = vmatprep.subr.mxu0 0.0
        %1872 = vmatpush1.msra.mxu0 0.0
        %1873 = vmatprep.subr.mxu0 0.0
        %1874 = vmatpush1.msra.mxu0 0.0
        %1875 = vmatprep.subr.mxu0 0.0
        %1876 = vmatpush1.msra.mxu0 0.0
        %1877 = vmatprep.subr.mxu0 0.0
        %1878 = vmatpush1.msra.mxu0 0.0
        %1879 = vmatprep.subr.mxu0 0.0
        %1880 = vmatpush1.msra.mxu0 0.0
        %1881 = vmatprep.subr.mxu0 0.0
        %1882 = vmatpush1.msra.mxu0 0.0
        %1883 = vmatprep.subr.mxu0 0.0
        %1884 = vmatpush1.msra.mxu0 0.0
        %1885 = vmatprep.subr.mxu0 0.0
        %1886 = vmatpush1.msra.mxu0 0.0
        %1887 = vmatprep.subr.mxu0 0.0
        %1888 = vmatpush1.msra.mxu0 0.0
        %1889 = vmatprep.subr.mxu0 0.0
        %1890 = vmatpush1.msra.mxu0 0.0
        %1891 = vmatprep.subr.mxu0 0.0
        %1892 = vmatpush1.msra.mxu0 0.0
        %1893 = vmatprep.subr.mxu0 %v1762
        %1894 = vmatpush1.msra.mxu0 %v1750
        %1895 = vmatprep.subr.mxu0 %v1761
        %1896 = vmatpush1.msra.mxu0 %v1749
        %1897 = vmatprep.subr.mxu0 %v1760
        %1898 = vmatpush1.msra.mxu0 %v1748
        %1899 = vmatprep.subr.mxu0 %v1759
        %1900 = vmatpush1.msra.mxu0 %v1747
        %1901 = vmatprep.subr.mxu0 0.0
        %1902 = vmatpush2.msra.mxu0 0.0
        %1903 = vmatprep.subr.mxu0 0.0
        %1904 = vmatpush2.msra.mxu0 0.0
        %1905 = vmatprep.subr.mxu0 0.0
        %1906 = vmatpush2.msra.mxu0 0.0
        %1907 = vmatprep.subr.mxu0 0.0
        %1908 = vmatpush2.msra.mxu0 0.0
        %1909 = vmatprep.subr.mxu0 0.0
        %1910 = vmatpush2.msra.mxu0 0.0
        %1911 = vmatprep.subr.mxu0 0.0
        %1912 = vmatpush2.msra.mxu0 0.0
        %1913 = vmatprep.subr.mxu0 0.0
        %1914 = vmatpush2.msra.mxu0 0.0
        %1915 = vmatprep.subr.mxu0 0.0
        %1916 = vmatpush2.msra.mxu0 0.0
        %1917 = vmatprep.subr.mxu0 0.0
        %1918 = vmatpush2.msra.mxu0 0.0
        %1919 = vmatprep.subr.mxu0 0.0
        %1920 = vmatpush2.msra.mxu0 0.0
        %1921 = vmatprep.subr.mxu0 0.0
        %1922 = vmatpush2.msra.mxu0 0.0
        %1923 = vmatprep.subr.mxu0 0.0
        %1924 = vmatpush2.msra.mxu0 0.0
        %1925 = vmatprep.subr.mxu0 0.0
        %1926 = vmatpush2.msra.mxu0 0.0
        %1927 = vmatprep.subr.mxu0 0.0
        %1928 = vmatpush2.msra.mxu0 0.0
        %1929 = vmatprep.subr.mxu0 0.0
        %1930 = vmatpush2.msra.mxu0 0.0
        %1931 = vmatprep.subr.mxu0 0.0
        %1932 = vmatpush2.msra.mxu0 0.0
        %1933 = vmatprep.mubr.f32.mxu0 0.0
        %1934 = vmatmul.mubr.f32.gmra.mxu0 %v1769
        %v1935 = vpop.f32.mrf.mxu0
        %v1936 = vadd.f32 0.0, %v1935
        %v1937 = vpop.f32.mrf.mxu0
        %v1938 = vadd.f32 0.0, %v1937
        %1939 = vmatprep.mubr.f32.mxu0 0.0
        %1940 = vmatmul.mubr.f32.gmra.mxu0 %v1772
        %v1941 = vpop.f32.mrf.mxu0
        %v1942 = vadd.f32 0.0, %v1941
        %v1943 = vpop.f32.mrf.mxu0
        %v1944 = vadd.f32 0.0, %v1943
        %1945 = vmatprep.mubr.f32.mxu0 0.0
        %1946 = vmatmul.mubr.f32.gmra.mxu0 %v1775
        %v1947 = vpop.f32.mrf.mxu0
        %v1948 = vadd.f32 0.0, %v1947
        %v1949 = vpop.f32.mrf.mxu0
        %v1950 = vadd.f32 0.0, %v1949
        %1951 = vmatprep.mubr.f32.mxu0 0.0
        %1952 = vmatmul.mubr.f32.gmra.mxu0 %v1778
        %v1953 = vpop.f32.mrf.mxu0
        %v1954 = vadd.f32 0.0, %v1953
        %v1955 = vpop.f32.mrf.mxu0
        %v1956 = vadd.f32 0.0, %v1955
        %1957 = vdwg.mxu0
        %v1959 = vsel %vm280, %v1710, 0
        %v1962 = vsel %vm280, %v1711, 0
        %v1965 = vsel %vm280, %v1712, 0
        %v1968 = vsel %vm280, %v1713, 0
        %1970 = vmatprep.subr.mxu0 0.0
        %1971 = vmatpush1.msra.mxu0 0.0
        %1972 = vmatprep.subr.mxu0 0.0
        %1973 = vmatpush1.msra.mxu0 0.0
        %1974 = vmatprep.subr.mxu0 0.0
        %1975 = vmatpush1.msra.mxu0 0.0
        %1976 = vmatprep.subr.mxu0 0.0
        %1977 = vmatpush1.msra.mxu0 0.0
        %1978 = vmatprep.subr.mxu0 0.0
        %1979 = vmatpush1.msra.mxu0 0.0
        %1980 = vmatprep.subr.mxu0 0.0
        %1981 = vmatpush1.msra.mxu0 0.0
        %1982 = vmatprep.subr.mxu0 0.0
        %1983 = vmatpush1.msra.mxu0 0.0
        %1984 = vmatprep.subr.mxu0 0.0
        %1985 = vmatpush1.msra.mxu0 0.0
        %1986 = vmatprep.subr.mxu0 0.0
        %1987 = vmatpush1.msra.mxu0 0.0
        %1988 = vmatprep.subr.mxu0 0.0
        %1989 = vmatpush1.msra.mxu0 0.0
        %1990 = vmatprep.subr.mxu0 0.0
        %1991 = vmatpush1.msra.mxu0 0.0
        %1992 = vmatprep.subr.mxu0 0.0
        %1993 = vmatpush1.msra.mxu0 0.0
        %1994 = vmatprep.subr.mxu0 %v1706
        %1995 = vmatpush1.msra.mxu0 %v1705
        %1996 = vmatprep.subr.mxu0 %v1702
        %1997 = vmatpush1.msra.mxu0 %v1701
        %1998 = vmatprep.subr.mxu0 %v1698
        %1999 = vmatpush1.msra.mxu0 %v1697
        %2000 = vmatprep.subr.mxu0 %v1694
        %2001 = vmatpush1.msra.mxu0 %v1693
        %2002 = vmatprep.subr.mxu0 0.0
        %2003 = vmatpush2.msra.mxu0 0.0
        %2004 = vmatprep.subr.mxu0 0.0
        %2005 = vmatpush2.msra.mxu0 0.0
        %2006 = vmatprep.subr.mxu0 0.0
        %2007 = vmatpush2.msra.mxu0 0.0
        %2008 = vmatprep.subr.mxu0 0.0
        %2009 = vmatpush2.msra.mxu0 0.0
        %2010 = vmatprep.subr.mxu0 0.0
        %2011 = vmatpush2.msra.mxu0 0.0
        %2012 = vmatprep.subr.mxu0 0.0
        %2013 = vmatpush2.msra.mxu0 0.0
        %2014 = vmatprep.subr.mxu0 0.0
        %2015 = vmatpush2.msra.mxu0 0.0
        %2016 = vmatprep.subr.mxu0 0.0
        %2017 = vmatpush2.msra.mxu0 0.0
        %2018 = vmatprep.subr.mxu0 0.0
        %2019 = vmatpush2.msra.mxu0 0.0
        %2020 = vmatprep.subr.mxu0 0.0
        %2021 = vmatpush2.msra.mxu0 0.0
        %2022 = vmatprep.subr.mxu0 0.0
        %2023 = vmatpush2.msra.mxu0 0.0
        %2024 = vmatprep.subr.mxu0 0.0
        %2025 = vmatpush2.msra.mxu0 0.0
        %2026 = vmatprep.subr.mxu0 0.0
        %2027 = vmatpush2.msra.mxu0 0.0
        %2028 = vmatprep.subr.mxu0 0.0
        %2029 = vmatpush2.msra.mxu0 0.0
        %2030 = vmatprep.subr.mxu0 0.0
        %2031 = vmatpush2.msra.mxu0 0.0
        %2032 = vmatprep.subr.mxu0 0.0
        %2033 = vmatpush2.msra.mxu0 0.0
        %2034 = vmatprep.mubr.f32.mxu0 0.0
        %2035 = vmatmul.mubr.f32.gmra.mxu0 %v1959
        %v2036 = vpop.f32.mrf.mxu0
        %v2037 = vadd.f32 %v1847, %v2036
        %v2038 = vpop.f32.mrf.mxu0
        %v2039 = vadd.f32 %v1849, %v2038
        %2040 = vmatprep.mubr.f32.mxu0 0.0
        %2041 = vmatmul.mubr.f32.gmra.mxu0 %v1962
        %v2042 = vpop.f32.mrf.mxu0
        %v2043 = vadd.f32 %v1853, %v2042
        %v2044 = vpop.f32.mrf.mxu0
        %v2045 = vadd.f32 %v1855, %v2044
        %2046 = vmatprep.mubr.f32.mxu0 0.0
        %2047 = vmatmul.mubr.f32.gmra.mxu0 %v1965
        %v2048 = vpop.f32.mrf.mxu0
        %v2049 = vadd.f32 %v1859, %v2048
        %v2050 = vpop.f32.mrf.mxu0
        %v2051 = vadd.f32 %v1861, %v2050
        %2052 = vmatprep.mubr.f32.mxu0 0.0
        %2053 = vmatmul.mubr.f32.gmra.mxu0 %v1968
        %v2054 = vpop.f32.mrf.mxu0
        %v2055 = vadd.f32 %v1865, %v2054
        %v2056 = vpop.f32.mrf.mxu0
        %v2057 = vadd.f32 %v1867, %v2056
        %2058 = vdwg.mxu0
        %2059 = vmatprep.subr.mxu0 0.0
        %2060 = vmatpush1.msra.mxu0 0.0
        %2061 = vmatprep.subr.mxu0 0.0
        %2062 = vmatpush1.msra.mxu0 0.0
        %2063 = vmatprep.subr.mxu0 0.0
        %2064 = vmatpush1.msra.mxu0 0.0
        %2065 = vmatprep.subr.mxu0 0.0
        %2066 = vmatpush1.msra.mxu0 0.0
        %2067 = vmatprep.subr.mxu0 0.0
        %2068 = vmatpush1.msra.mxu0 0.0
        %2069 = vmatprep.subr.mxu0 0.0
        %2070 = vmatpush1.msra.mxu0 0.0
        %2071 = vmatprep.subr.mxu0 0.0
        %2072 = vmatpush1.msra.mxu0 0.0
        %2073 = vmatprep.subr.mxu0 0.0
        %2074 = vmatpush1.msra.mxu0 0.0
        %2075 = vmatprep.subr.mxu0 0.0
        %2076 = vmatpush1.msra.mxu0 0.0
        %2077 = vmatprep.subr.mxu0 0.0
        %2078 = vmatpush1.msra.mxu0 0.0
        %2079 = vmatprep.subr.mxu0 0.0
        %2080 = vmatpush1.msra.mxu0 0.0
        %2081 = vmatprep.subr.mxu0 0.0
        %2082 = vmatpush1.msra.mxu0 0.0
        %2083 = vmatprep.subr.mxu0 %v1708
        %2084 = vmatpush1.msra.mxu0 %v1707
        %2085 = vmatprep.subr.mxu0 %v1704
        %2086 = vmatpush1.msra.mxu0 %v1703
        %2087 = vmatprep.subr.mxu0 %v1700
        %2088 = vmatpush1.msra.mxu0 %v1699
        %2089 = vmatprep.subr.mxu0 %v1696
        %2090 = vmatpush1.msra.mxu0 %v1695
        %2091 = vmatprep.subr.mxu0 0.0
        %2092 = vmatpush2.msra.mxu0 0.0
        %2093 = vmatprep.subr.mxu0 0.0
        %2094 = vmatpush2.msra.mxu0 0.0
        %2095 = vmatprep.subr.mxu0 0.0
        %2096 = vmatpush2.msra.mxu0 0.0
        %2097 = vmatprep.subr.mxu0 0.0
        %2098 = vmatpush2.msra.mxu0 0.0
        %2099 = vmatprep.subr.mxu0 0.0
        %2100 = vmatpush2.msra.mxu0 0.0
        %2101 = vmatprep.subr.mxu0 0.0
        %2102 = vmatpush2.msra.mxu0 0.0
        %2103 = vmatprep.subr.mxu0 0.0
        %2104 = vmatpush2.msra.mxu0 0.0
        %2105 = vmatprep.subr.mxu0 0.0
        %2106 = vmatpush2.msra.mxu0 0.0
        %2107 = vmatprep.subr.mxu0 0.0
        %2108 = vmatpush2.msra.mxu0 0.0
        %2109 = vmatprep.subr.mxu0 0.0
        %2110 = vmatpush2.msra.mxu0 0.0
        %2111 = vmatprep.subr.mxu0 0.0
        %2112 = vmatpush2.msra.mxu0 0.0
        %2113 = vmatprep.subr.mxu0 0.0
        %2114 = vmatpush2.msra.mxu0 0.0
        %2115 = vmatprep.subr.mxu0 0.0
        %2116 = vmatpush2.msra.mxu0 0.0
        %2117 = vmatprep.subr.mxu0 0.0
        %2118 = vmatpush2.msra.mxu0 0.0
        %2119 = vmatprep.subr.mxu0 0.0
        %2120 = vmatpush2.msra.mxu0 0.0
        %2121 = vmatprep.subr.mxu0 0.0
        %2122 = vmatpush2.msra.mxu0 0.0
        %2123 = vmatprep.mubr.f32.mxu0 0.0
        %2124 = vmatmul.mubr.f32.gmra.mxu0 %v1959
        %v2125 = vpop.f32.mrf.mxu0
        %v2126 = vadd.f32 %v1936, %v2125
        %v2127 = vpop.f32.mrf.mxu0
        %v2128 = vadd.f32 %v1938, %v2127
        %2129 = vmatprep.mubr.f32.mxu0 0.0
        %2130 = vmatmul.mubr.f32.gmra.mxu0 %v1962
        %v2131 = vpop.f32.mrf.mxu0
        %v2132 = vadd.f32 %v1942, %v2131
        %v2133 = vpop.f32.mrf.mxu0
        %v2134 = vadd.f32 %v1944, %v2133
        %2135 = vmatprep.mubr.f32.mxu0 0.0
        %2136 = vmatmul.mubr.f32.gmra.mxu0 %v1965
        %v2137 = vpop.f32.mrf.mxu0
        %v2138 = vadd.f32 %v1948, %v2137
        %v2139 = vpop.f32.mrf.mxu0
        %v2140 = vadd.f32 %v1950, %v2139
        %2141 = vmatprep.mubr.f32.mxu0 0.0
        %2142 = vmatmul.mubr.f32.gmra.mxu0 %v1968
        %v2143 = vpop.f32.mrf.mxu0
        %v2144 = vadd.f32 %v1954, %v2143
        %v2145 = vpop.f32.mrf.mxu0
        %v2146 = vadd.f32 %v1956, %v2145
        %2147 = vdwg.mxu0
        %s2148 = scalar_lea.vmem %s2, 96
        %v2149 = vld [vmem:[%s2148] sm:$0xff]
        %v2150 = vld [vmem:[%s2148 + $0x8] sm:$0xff]
        %v2151 = vld [vmem:[%s2148 + $0x10] sm:$0xff]
        %v2152 = vld [vmem:[%s2148 + $0x18] sm:$0xff]
        %2154 = vset.pattern.permute.xlu0 0
        %2155 = vperm.xlu0 %2154, %v2149
        %v2156 = vpop.permute.xlu0 %2155
        %2159 = vset.pattern.permute.xlu0 0
        %2160 = vperm.xlu0 %2159, %v2150
        %v2161 = vpop.permute.xlu0 %2160
        %2164 = vset.pattern.permute.xlu0 0
        %2165 = vperm.xlu0 %2164, %v2151
        %v2166 = vpop.permute.xlu0 %2165
        %2169 = vset.pattern.permute.xlu0 0
        %2170 = vperm.xlu0 %2169, %v2152
        %v2171 = vpop.permute.xlu0 %2170
        %v2173 = vadd.f32 %v2037, %v2156
        %v2174 = vadd.f32 %v2039, %v2156
        %v2175 = vadd.f32 %v2126, %v2156
        %v2176 = vadd.f32 %v2128, %v2156
        %v2177 = vadd.f32 %v2043, %v2161
        %v2178 = vadd.f32 %v2045, %v2161
        %v2179 = vadd.f32 %v2132, %v2161
        %v2180 = vadd.f32 %v2134, %v2161
        %v2181 = vadd.f32 %v2049, %v2166
        %v2182 = vadd.f32 %v2051, %v2166
        %v2183 = vadd.f32 %v2138, %v2166
        %v2184 = vadd.f32 %v2140, %v2166
        %v2185 = vadd.f32 %v2055, %v2171
        %v2186 = vadd.f32 %v2057, %v2171
        %v2187 = vadd.f32 %v2144, %v2171
        %v2188 = vadd.f32 %v2146, %v2171
        %2189 = vst [vmem:[%s203] sm:$0xff] %v2173
        %2190 = vst [vmem:[%s203 + $0x8] sm:$0xff] %v2174
        %2191 = vst [vmem:[%s203 + $0x10] sm:$0xff] %v2175
        %2192 = vst [vmem:[%s203 + $0x18] sm:$0xff] %v2176
        %2193 = vst [vmem:[%s203 + $0x20] sm:$0xff] %v2177
        %2194 = vst [vmem:[%s203 + $0x28] sm:$0xff] %v2178
        %2195 = vst [vmem:[%s203 + $0x30] sm:$0xff] %v2179
        %2196 = vst [vmem:[%s203 + $0x38] sm:$0xff] %v2180
        %2197 = vst [vmem:[%s203 + $0x40] sm:$0xff] %v2181
        %2198 = vst [vmem:[%s203 + $0x48] sm:$0xff] %v2182
        %2199 = vst [vmem:[%s203 + $0x50] sm:$0xff] %v2183
        %2200 = vst [vmem:[%s203 + $0x58] sm:$0xff] %v2184
        %2201 = vst [vmem:[%s203 + $0x60] sm:$0xff] %v2185
        %2202 = vst [vmem:[%s203 + $0x68] sm:$0xff] %v2186
        %2203 = vst [vmem:[%s203 + $0x70] sm:$0xff] %v2187
        %2204 = vst [vmem:[%s203 + $0x78] sm:$0xff] %v2188
        %s2205 = sand.u32 %s97, 1
        %s2206 = scalar_lea.sflag [#allocation4], %s2205
        %s2207 = sand.u32 %s97, 1
        %s2208 = smul.addr %s2207, 128
        %s2209 = scalar_lea.vmem [#allocation7], %s2208
        // Predicated region
        $region41: #{tpu_custom_call.1} parent=31 // pred_check
          %p2210 = pneg %p107
        $region42: #{tpu_custom_call.1} parent=31 // pred_check_branch
          %2212 = sbr.rel (%p2210) target = $region44
        $region43: #{tpu_custom_call.1} parent=31 // pred_region
          %s2214 = ssub.s32 2048, 2048
          %2215 = vsyncadd %s2206, %s2214
          %s2216 = smul.addr %s21, 16
          %s2217 = smul.addr %s2216, 128
          %s2218 = scalar_lea.hbm %s3, %s2217
          %s2219 = sshll.u32 %s2209, 4
          %s2220 = int_to_ptr.vmem [resolvable:$true] %s2219
          %2225 = dma.vmem_to_hbm [thread:$0]  %s2220, 2048, %s2218, %s2206, 512, 512, 32
        $region44: #{tpu_custom_call.1} parent=31 // pred_fallthru
          _
      $region32: #{tpu_custom_call.1} parent=5 // pred_fallthru
        _
      %p2226 = scmp.le.s32.totalorder 2, %s16
      // Predicated region
      $region45: #{tpu_custom_call.1} parent=5 // pred_check
        %p2227 = pneg %p2226
      $region46: #{tpu_custom_call.1} parent=5 // pred_check_branch
        %2229 = sbr.rel (%p2227) target = $region48
      $region47: #{tpu_custom_call.1} parent=5 // pred_region
        %s2230 = ssub.s32 %s16, 2
        // Predicated region
        $region49: #{tpu_custom_call.1} parent=47 // pred_check
          %p2231 = pneg %p113
        $region50: #{tpu_custom_call.1} parent=47 // pred_check_branch
          %2233 = sbr.rel (%p2231) target = $region52
        $region51: #{tpu_custom_call.1} parent=47 // pred_region
          %s2234 = sand.u32 %s98, 1
          %s2235 = scalar_lea.sflag [#allocation4], %s2234
          %s2236 = sand.u32 %s98, 1
          %s2237 = smul.addr %s2236, 128
          %s2238 = scalar_lea.vmem [#allocation7], %s2237
          %2239 = dma.done %s2235, 2048
        $region52: #{tpu_custom_call.1} parent=47 // pred_fallthru
          _
      $region48: #{tpu_custom_call.1} parent=5 // pred_fallthru
        _
    $region6: #{tpu_custom_call.1} parent=1 // loop_footer
      %s20 = sadd.s32 1, %s16
    $region7: #{tpu_custom_call.1} parent=1 // loop_footer_branch
      %15 = sbr.rel target = $region3
    $region8: #{tpu_custom_call.1} parent=1 // loop_exit
      _
    %2240 = vsyncpa [#allocation3], 1
    %s2241 = scalar_lea.sflag [#allocation3], 1
    %2242 = vsyncpa %s2241, 1
    %2243 = vsyncpa [#allocation6], 1
    %2244 = vsyncpa [#allocation4], 1
    %s2245 = scalar_lea.sflag [#allocation4], 1
    %2246 = vsyncpa %s2245, 1

</llo_original>
